<compile_context>
chip_gen: v6e
topology: v6e:2x2x1
jax: 0.10.0
libtpu: 0.0.40
codegen_flags: <defaults>
</compile_context>

<pallas_src>
import jax
import jax.numpy as jnp
import numpy as np
from jax import lax
from jax.experimental import pallas as pl
from jax.experimental.pallas import tpu as pltpu

LOOKBACK = 4      # input_size
HIDDEN = 100      # true hidden size
HP = 128          # lane-padded hidden size
BB = 8            # batch rows per grid block (sublane multiple)

# Kernel gate column order is [i | f | o | g]; PyTorch nn.LSTM rows are
# [i, f, g, o].  dst slot k takes PyTorch gate GATE_PERM[k].
GATE_PERM = (0, 1, 3, 2)


def make_lstm_kernel(T):
    """Build the kernel closure for static T (time steps); batch block is BB."""

    def lstm_kernel(x_ref, wih_ref, whh_ref, b_ref, wlin_ref, blin_ref,
                    out_ref, xw_sc, hall_sc):
        # x_ref   : (T*BB, I)      time-major rows for this batch block
        # wih_ref : (I, 4*HP)  f32 padded, transposed input->gate weights [i|f|o|g]
        # whh_ref : (HP, 4*HP) bf16 padded, transposed hidden->gate weights
        # b_ref   : (1, 4*HP)  f32 combined (b_ih + b_hh), padded, [i|f|o|g]
        # wlin_ref: (1, HP)    f32 final Linear weight as a lane row (pad = 0)
        # blin_ref: (1, 1)     f32 final Linear bias
        # out_ref : (T*BB, 1)      outputs for every (t, b) in this block
        # xw_sc   : (T*BB, 4*HP)   precomputed x@W_ih + b   (VMEM scratch)
        # hall_sc : (T*BB, HP)     all hidden states         (VMEM scratch)

        # ---- Prologue: non-recurrent input contribution, one MXU matmul.
        # Bias broadcast happens exactly once here (hoisted out of the loop).
        xw_sc[...] = (jnp.dot(x_ref[...], wih_ref[...],
                              preferred_element_type=jnp.float32)
                      + b_ref[...])

        # ---- Serial recurrence over time (latency-bound dependence chain).
        def step(t, carry):
            h, c = carry
            row = pl.multiple_of(t * BB, BB)
            gates = xw_sc[pl.ds(row, BB), :] + jnp.dot(
                h.astype(whh_ref.dtype), whh_ref[...],
                preferred_element_type=jnp.float32)          # (BB, 4*HP) f32

            # One sigmoid over [i|f|o] (contiguous 3*HP lanes), one tanh for g.
            sig = jax.nn.sigmoid(gates[:, :3 * HP])
            i_g = sig[:, 0 * HP:1 * HP]
            f_g = sig[:, 1 * HP:2 * HP]
            o_g = sig[:, 2 * HP:3 * HP]
            g_g = jnp.tanh(gates[:, 3 * HP:4 * HP])

            c = f_g * c + i_g * g_g      # padded lanes stay 0 (g == 0 there)
            h = o_g * jnp.tanh(c)        # padded lanes stay 0
            hall_sc[pl.ds(row, BB), :] = h
            return h, c

        h0 = jnp.zeros((BB, HP), jnp.float32)
        c0 = jnp.zeros((BB, HP), jnp.float32)
        lax.fori_loop(0, T, step, (h0, c0), unroll=min(T, 8))

        # ---- Epilogue: Linear(100 -> 1) as VPU multiply + lane reduction
        # (MXU slots idle; N=1 matmul would waste 1/128..1/256 of MXU width).
        out_ref[...] = (jnp.sum(hall_sc[...] * wlin_ref[...],
                                axis=-1, keepdims=True)
                        + blin_ref[...])

    return lstm_kernel


def _pad_gates_transposed(w, in_dim):
    """w: (4*HIDDEN, in_dim) PyTorch [i,f,g,o] -> (in_dim, 4*HP), cols [i,f,o,g]."""
    out = np.zeros((in_dim, 4 * HP), dtype=np.float32)
    w = np.asarray(w, dtype=np.float32)
    for dst, src in enumerate(GATE_PERM):
        out[:, dst * HP:dst * HP + HIDDEN] = w[src * HIDDEN:(src + 1) * HIDDEN, :].T
    return out


def _pad_gate_bias(b_ih, b_hh):
    out = np.zeros((1, 4 * HP), dtype=np.float32)
    b = np.asarray(b_ih, np.float32) + np.asarray(b_hh, np.float32)
    for dst, src in enumerate(GATE_PERM):
        out[0, dst * HP:dst * HP + HIDDEN] = b[src * HIDDEN:(src + 1) * HIDDEN]
    return jnp.asarray(out)


def lstm_forward(x, w_ih, w_hh, b_ih, b_hh, w_lin, b_lin):
    """x: (B, T, LOOKBACK) float32 -> (B, T, 1) float32 (matches PyTorch module)."""
    B, T, I = x.shape
    assert I == LOOKBACK
    n_blk = max(1, pl.cdiv(B, BB))        # batch blocks of BB rows each
    B_pad = n_blk * BB

    # ---- parameter plumbing (host-side glue, outside the kernel) ----
    wih_t = jnp.asarray(_pad_gates_transposed(w_ih, I))            # (I, 4*HP) f32

    whh_np = np.zeros((HP, 4 * HP), dtype=np.float32)
    whh_np[:HIDDEN, :] = _pad_gates_transposed(w_hh, HIDDEN)
    # bf16 weights only for the recurrent matmul; accumulate stays f32.
    whh_t = jnp.asarray(whh_np, dtype=jnp.bfloat16)                # (HP, 4*HP) bf16

    b = _pad_gate_bias(b_ih, b_hh)                                 # (1, 4*HP) f32

    wlin_np = np.zeros((1, HP), dtype=np.float32)
    wlin_np[0, :HIDDEN] = np.asarray(w_lin, np.float32).reshape(-1)
    wlin = jnp.asarray(wlin_np)                                    # (1, HP)
    blin = jnp.asarray(np.asarray(b_lin, np.float32).reshape(1, 1))

    # Block-major, time-major, batch-padded input:
    # rows ordered [block0: (t0,b0..7),(t1,b0..7),... | block1: ...]
    x_p = jnp.pad(x.astype(jnp.float32),
                  ((0, B_pad - B), (0, 0), (0, 0)))                # (B_pad, T, I)
    x_p = x_p.reshape(n_blk, BB, T, I).transpose(0, 2, 1, 3)       # (n_blk, T, BB, I)
    x_flat = x_p.reshape(n_blk * T * BB, I)

    kernel = make_lstm_kernel(T)

    out_flat = pl.pallas_call(
        kernel,
        out_shape=jax.ShapeDtypeStruct((n_blk * T * BB, 1), jnp.float32),
        grid_spec=pltpu.PrefetchScalarGridSpec(
            num_scalar_prefetch=0,
            grid=(n_blk,),                              # batch-parallel axis
            in_specs=[
                pl.BlockSpec((T * BB, I), lambda bb: (bb, 0)),
                pl.BlockSpec((I, 4 * HP), lambda bb: (0, 0)),
                pl.BlockSpec((HP, 4 * HP), lambda bb: (0, 0)),
                pl.BlockSpec((1, 4 * HP), lambda bb: (0, 0)),
                pl.BlockSpec((1, HP), lambda bb: (0, 0)),
                pl.BlockSpec((1, 1), lambda bb: (0, 0)),
            ],
            out_specs=pl.BlockSpec((T * BB, 1), lambda bb: (bb, 0)),
            scratch_shapes=[
                pltpu.VMEM((T * BB, 4 * HP), jnp.float32),   # x@W_ih + b
                pltpu.VMEM((T * BB, HP), jnp.float32),       # all hidden states
            ],
        ),
        compiler_params=pltpu.CompilerParams(
            dimension_semantics=("parallel",)),         # shards blocks on v7x
    )(x_flat, wih_t, whh_t, b, wlin, blin)

    out = out_flat.reshape(n_blk, T, BB, 1).transpose(0, 2, 1, 3)  # (n_blk, BB, T, 1)
    out = out.reshape(B_pad, T, 1)[:B]                             # drop padded rows
    return out                                                     # (B, T, 1)


def lstm_ref(x, w_ih, w_hh, b_ih, b_hh, w_lin, b_lin):
    """Pure-JAX reference with PyTorch nn.LSTM gate order [i, f, g, o]."""
    B, T, _ = x.shape
    H = HIDDEN
    h = jnp.zeros((B, H), jnp.float32)
    c = jnp.zeros((B, H), jnp.float32)
    outs = []
    for t in range(T):
        gates = x[:, t] @ w_ih.T + h @ w_hh.T + b_ih + b_hh
        i = jax.nn.sigmoid(gates[:, 0 * H:1 * H])
        f = jax.nn.sigmoid(gates[:, 1 * H:2 * H])
        g = jnp.tanh(gates[:, 2 * H:3 * H])
        o = jax.nn.sigmoid(gates[:, 3 * H:4 * H])
        c = f * c + i * g
        h = o * jnp.tanh(c)
        outs.append(h @ w_lin.T + b_lin)
    return jnp.stack(outs, axis=1)   # (B, T, 1)


if __name__ == "__main__":
    key = jax.random.PRNGKey(0)
    ks = jax.random.split(key, 7)

    B, T = 2, 8
    bound = 1.0 / np.sqrt(HIDDEN)   # PyTorch default init scale for LSTM/Linear

    w_ih = jax.random.uniform(ks[0], (4 * HIDDEN, LOOKBACK), jnp.float32, -bound, bound)
    w_hh = jax.random.uniform(ks[1], (4 * HIDDEN, HIDDEN), jnp.float32, -bound, bound)
    b_ih = jax.random.uniform(ks[2], (4 * HIDDEN,), jnp.float32, -bound, bound)
    b_hh = jax.random.uniform(ks[3], (4 * HIDDEN,), jnp.float32, -bound, bound)
    w_lin = jax.random.uniform(ks[4], (1, HIDDEN), jnp.float32, -bound, bound)
    b_lin = jax.random.uniform(ks[5], (1,), jnp.float32, -bound, bound)

    x = jax.random.normal(ks[6], (B, T, LOOKBACK), jnp.float32)

    out = lstm_forward(x, w_ih, w_hh, b_ih, b_hh, w_lin, b_lin)
    out = jax.block_until_ready(out)

    ref = lstm_ref(x, w_ih, w_hh, b_ih, b_hh, w_lin, b_lin)
    assert out.shape == (B, T, 1), out.shape
    np.testing.assert_allclose(np.asarray(out), np.asarray(ref), atol=3e-2, rtol=3e-2)

    print("KERNEL_OK")
</pallas_src>

<mosaic_0001>
module attributes {stable_mosaic.version = 11 : i64} {
  func.func @lstm_kernel(%arg0: i32, %arg1: memref<64x4xf32, #tpu.memory_space<vmem>>, %arg2: memref<4x512xf32, #tpu.memory_space<vmem>>, %arg3: memref<128x512xbf16, #tpu.memory_space<vmem>>, %arg4: memref<1x512xf32, #tpu.memory_space<vmem>>, %arg5: memref<1x128xf32, #tpu.memory_space<vmem>>, %arg6: memref<1x1xf32, #tpu.memory_space<vmem>>, %arg7: memref<64x1xf32, #tpu.memory_space<vmem>>, %arg8: memref<64x512xf32, #tpu.memory_space<vmem>>, %arg9: memref<64x128xf32, #tpu.memory_space<vmem>>) attributes {dimension_semantics = [#tpu.dimension_semantics<parallel>], iteration_bounds = array<i64: 1>, scalar_prefetch = 0 : i64, scratch_operands = 2 : i64, tpu.core_type = #tpu.core_type<tc>, window_params = [{transform_indices = @transform_0, window_bounds = array<i64: 64, 4>}, {pipeline_mode = #tpu.pipeline_mode<synchronous>, transform_indices = @transform_1, window_bounds = array<i64: 4, 512>}, {pipeline_mode = #tpu.pipeline_mode<synchronous>, transform_indices = @transform_2, window_bounds = array<i64: 128, 512>}, {pipeline_mode = #tpu.pipeline_mode<synchronous>, transform_indices = @transform_3, window_bounds = array<i64: 1, 512>}, {pipeline_mode = #tpu.pipeline_mode<synchronous>, transform_indices = @transform_4, window_bounds = array<i64: 1, 128>}, {pipeline_mode = #tpu.pipeline_mode<synchronous>, transform_indices = @transform_5, window_bounds = array<i64: 1, 1>}, {transform_indices = @transform_6, window_bounds = array<i64: 64, 1>}]} {
    %c0 = arith.constant 0 : index
    %c0_0 = arith.constant 0 : index
    %0 = vector.load %arg1[%c0, %c0_0] : memref<64x4xf32, #tpu.memory_space<vmem>>, vector<64x4xf32>
    %c0_1 = arith.constant 0 : index
    %c0_2 = arith.constant 0 : index
    %1 = vector.load %arg2[%c0_1, %c0_2] : memref<4x512xf32, #tpu.memory_space<vmem>>, vector<4x512xf32>
    %cst = arith.constant dense<0.000000e+00> : vector<64x512xf32>
    %2 = tpu.matmul %0, %1, %cst {dimension_numbers = #tpu.dot_dimension_numbers<[1], [0], [0], [1], [0, 0, 1, 1], [], []>} : vector<64x4xf32>, vector<4x512xf32>, vector<64x512xf32> -> vector<64x512xf32>
    %c0_3 = arith.constant 0 : index
    %c0_4 = arith.constant 0 : index
    %3 = vector.load %arg4[%c0_3, %c0_4] : memref<1x512xf32, #tpu.memory_space<vmem>>, vector<1x512xf32>
    %4 = vector.broadcast %3 : vector<1x512xf32> to vector<64x512xf32>
    %5 = arith.addf %2, %4 : vector<64x512xf32>
    %c0_5 = arith.constant 0 : index
    %c0_6 = arith.constant 0 : index
    %6 = vector.load %arg8[%c0_5, %c0_6] : memref<64x512xf32, #tpu.memory_space<vmem>>, vector<64x512xf32>
    tpu.vector_store %arg8[%c0_5, %c0_6], %5 {strides = array<i32>} : memref<64x512xf32, #tpu.memory_space<vmem>>, vector<64x512xf32>,
    %cst_7 = arith.constant 0.000000e+00 : f32
    %7 = vector.broadcast %cst_7 : f32 to vector<8x128xf32>
    %cst_8 = arith.constant 0.000000e+00 : f32
    %8 = vector.broadcast %cst_8 : f32 to vector<8x128xf32>
    %c0_i32 = arith.constant 0 : i32
    %c8_i32 = arith.constant 8 : i32
    %9 = arith.muli %c0_i32, %c8_i32 : i32
    %10 = tpu.assume_multiple %9, 8 : i32
    %11 = arith.index_cast %10 : i32 to index
    %c0_9 = arith.constant 0 : index
    %12 = vector.load %arg8[%11, %c0_9] : memref<64x512xf32, #tpu.memory_space<vmem>>, vector<8x512xf32>
    %13 = arith.truncf %7 : vector<8x128xf32> to vector<8x128xbf16>
    %c0_10 = arith.constant 0 : index
    %c0_11 = arith.constant 0 : index
    %14 = vector.load %arg3[%c0_10, %c0_11] : memref<128x512xbf16, #tpu.memory_space<vmem>>, vector<128x512xbf16>
    %cst_12 = arith.constant dense<0.000000e+00> : vector<8x512xf32>
    %15 = tpu.matmul %13, %14, %cst_12 {dimension_numbers = #tpu.dot_dimension_numbers<[1], [0], [0], [1], [0, 0, 1, 1], [], []>} : vector<8x128xbf16>, vector<128x512xbf16>, vector<8x512xf32> -> vector<8x512xf32>
    %16 = arith.addf %12, %15 : vector<8x512xf32>
    %17 = vector.extract_strided_slice %16 {offsets = [0, 0], sizes = [8, 384], strides = [1, 1]} : vector<8x512xf32> to vector<8x384xf32>
    %18 = arith.negf %17 : vector<8x384xf32>
    %19 = math.exp %18 : vector<8x384xf32>
    %cst_13 = arith.constant 1.000000e+00 : f32
    %20 = vector.broadcast %cst_13 : f32 to vector<8x384xf32>
    %21 = arith.addf %20, %19 : vector<8x384xf32>
    %22 = arith.divf %20, %21 : vector<8x384xf32>
    %23 = vector.extract_strided_slice %22 {offsets = [0, 0], sizes = [8, 128], strides = [1, 1]} : vector<8x384xf32> to vector<8x128xf32>
    %24 = vector.extract_strided_slice %22 {offsets = [0, 128], sizes = [8, 128], strides = [1, 1]} : vector<8x384xf32> to vector<8x128xf32>
    %25 = vector.extract_strided_slice %22 {offsets = [0, 256], sizes = [8, 128], strides = [1, 1]} : vector<8x384xf32> to vector<8x128xf32>
    %26 = vector.extract_strided_slice %16 {offsets = [0, 384], sizes = [8, 128], strides = [1, 1]} : vector<8x512xf32> to vector<8x128xf32>
    %27 = math.tanh %26 : vector<8x128xf32>
    %28 = arith.mulf %24, %8 : vector<8x128xf32>
    %29 = arith.mulf %23, %27 : vector<8x128xf32>
    %30 = arith.addf %28, %29 : vector<8x128xf32>
    %31 = math.tanh %30 : vector<8x128xf32>
    %32 = arith.mulf %25, %31 : vector<8x128xf32>
    %33 = arith.index_cast %10 : i32 to index
    %c0_14 = arith.constant 0 : index
    %34 = vector.load %arg9[%33, %c0_14] : memref<64x128xf32, #tpu.memory_space<vmem>>, vector<8x128xf32>
    tpu.vector_store %arg9[%33, %c0_14], %32 {strides = array<i32>} : memref<64x128xf32, #tpu.memory_space<vmem>>, vector<8x128xf32>,
    %c1_i32 = arith.constant 1 : i32
    %c8_i32_15 = arith.constant 8 : i32
    %35 = arith.muli %c1_i32, %c8_i32_15 : i32
    %36 = tpu.assume_multiple %35, 8 : i32
    %37 = arith.index_cast %36 : i32 to index
    %c0_16 = arith.constant 0 : index
    %38 = vector.load %arg8[%37, %c0_16] : memref<64x512xf32, #tpu.memory_space<vmem>>, vector<8x512xf32>
    %39 = arith.truncf %32 : vector<8x128xf32> to vector<8x128xbf16>
    %c0_17 = arith.constant 0 : index
    %c0_18 = arith.constant 0 : index
    %40 = vector.load %arg3[%c0_17, %c0_18] : memref<128x512xbf16, #tpu.memory_space<vmem>>, vector<128x512xbf16>
    %cst_19 = arith.constant dense<0.000000e+00> : vector<8x512xf32>
    %41 = tpu.matmul %39, %40, %cst_19 {dimension_numbers = #tpu.dot_dimension_numbers<[1], [0], [0], [1], [0, 0, 1, 1], [], []>} : vector<8x128xbf16>, vector<128x512xbf16>, vector<8x512xf32> -> vector<8x512xf32>
    %42 = arith.addf %38, %41 : vector<8x512xf32>
    %43 = vector.extract_strided_slice %42 {offsets = [0, 0], sizes = [8, 384], strides = [1, 1]} : vector<8x512xf32> to vector<8x384xf32>
    %44 = arith.negf %43 : vector<8x384xf32>
    %45 = math.exp %44 : vector<8x384xf32>
    %cst_20 = arith.constant 1.000000e+00 : f32
    %46 = vector.broadcast %cst_20 : f32 to vector<8x384xf32>
    %47 = arith.addf %46, %45 : vector<8x384xf32>
    %48 = arith.divf %46, %47 : vector<8x384xf32>
    %49 = vector.extract_strided_slice %48 {offsets = [0, 0], sizes = [8, 128], strides = [1, 1]} : vector<8x384xf32> to vector<8x128xf32>
    %50 = vector.extract_strided_slice %48 {offsets = [0, 128], sizes = [8, 128], strides = [1, 1]} : vector<8x384xf32> to vector<8x128xf32>
    %51 = vector.extract_strided_slice %48 {offsets = [0, 256], sizes = [8, 128], strides = [1, 1]} : vector<8x384xf32> to vector<8x128xf32>
    %52 = vector.extract_strided_slice %42 {offsets = [0, 384], sizes = [8, 128], strides = [1, 1]} : vector<8x512xf32> to vector<8x128xf32>
    %53 = math.tanh %52 : vector<8x128xf32>
    %54 = arith.mulf %50, %30 : vector<8x128xf32>
    %55 = arith.mulf %49, %53 : vector<8x128xf32>
    %56 = arith.addf %54, %55 : vector<8x128xf32>
    %57 = math.tanh %56 : vector<8x128xf32>
    %58 = arith.mulf %51, %57 : vector<8x128xf32>
    %59 = arith.index_cast %36 : i32 to index
    %c0_21 = arith.constant 0 : index
    %60 = vector.load %arg9[%59, %c0_21] : memref<64x128xf32, #tpu.memory_space<vmem>>, vector<8x128xf32>
    tpu.vector_store %arg9[%59, %c0_21], %58 {strides = array<i32>} : memref<64x128xf32, #tpu.memory_space<vmem>>, vector<8x128xf32>,
    %c2_i32 = arith.constant 2 : i32
    %c8_i32_22 = arith.constant 8 : i32
    %61 = arith.muli %c2_i32, %c8_i32_22 : i32
    %62 = tpu.assume_multiple %61, 8 : i32
    %63 = arith.index_cast %62 : i32 to index
    %c0_23 = arith.constant 0 : index
    %64 = vector.load %arg8[%63, %c0_23] : memref<64x512xf32, #tpu.memory_space<vmem>>, vector<8x512xf32>
    %65 = arith.truncf %58 : vector<8x128xf32> to vector<8x128xbf16>
    %c0_24 = arith.constant 0 : index
    %c0_25 = arith.constant 0 : index
    %66 = vector.load %arg3[%c0_24, %c0_25] : memref<128x512xbf16, #tpu.memory_space<vmem>>, vector<128x512xbf16>
    %cst_26 = arith.constant dense<0.000000e+00> : vector<8x512xf32>
    %67 = tpu.matmul %65, %66, %cst_26 {dimension_numbers = #tpu.dot_dimension_numbers<[1], [0], [0], [1], [0, 0, 1, 1], [], []>} : vector<8x128xbf16>, vector<128x512xbf16>, vector<8x512xf32> -> vector<8x512xf32>
    %68 = arith.addf %64, %67 : vector<8x512xf32>
    %69 = vector.extract_strided_slice %68 {offsets = [0, 0], sizes = [8, 384], strides = [1, 1]} : vector<8x512xf32> to vector<8x384xf32>
    %70 = arith.negf %69 : vector<8x384xf32>
    %71 = math.exp %70 : vector<8x384xf32>
    %cst_27 = arith.constant 1.000000e+00 : f32
    %72 = vector.broadcast %cst_27 : f32 to vector<8x384xf32>
    %73 = arith.addf %72, %71 : vector<8x384xf32>
    %74 = arith.divf %72, %73 : vector<8x384xf32>
    %75 = vector.extract_strided_slice %74 {offsets = [0, 0], sizes = [8, 128], strides = [1, 1]} : vector<8x384xf32> to vector<8x128xf32>
    %76 = vector.extract_strided_slice %74 {offsets = [0, 128], sizes = [8, 128], strides = [1, 1]} : vector<8x384xf32> to vector<8x128xf32>
    %77 = vector.extract_strided_slice %74 {offsets = [0, 256], sizes = [8, 128], strides = [1, 1]} : vector<8x384xf32> to vector<8x128xf32>
    %78 = vector.extract_strided_slice %68 {offsets = [0, 384], sizes = [8, 128], strides = [1, 1]} : vector<8x512xf32> to vector<8x128xf32>
    %79 = math.tanh %78 : vector<8x128xf32>
    %80 = arith.mulf %76, %56 : vector<8x128xf32>
    %81 = arith.mulf %75, %79 : vector<8x128xf32>
    %82 = arith.addf %80, %81 : vector<8x128xf32>
    %83 = math.tanh %82 : vector<8x128xf32>
    %84 = arith.mulf %77, %83 : vector<8x128xf32>
    %85 = arith.index_cast %62 : i32 to index
    %c0_28 = arith.constant 0 : index
    %86 = vector.load %arg9[%85, %c0_28] : memref<64x128xf32, #tpu.memory_space<vmem>>, vector<8x128xf32>
    tpu.vector_store %arg9[%85, %c0_28], %84 {strides = array<i32>} : memref<64x128xf32, #tpu.memory_space<vmem>>, vector<8x128xf32>,
    %c3_i32 = arith.constant 3 : i32
    %c8_i32_29 = arith.constant 8 : i32
    %87 = arith.muli %c3_i32, %c8_i32_29 : i32
    %88 = tpu.assume_multiple %87, 8 : i32
    %89 = arith.index_cast %88 : i32 to index
    %c0_30 = arith.constant 0 : index
    %90 = vector.load %arg8[%89, %c0_30] : memref<64x512xf32, #tpu.memory_space<vmem>>, vector<8x512xf32>
    %91 = arith.truncf %84 : vector<8x128xf32> to vector<8x128xbf16>
    %c0_31 = arith.constant 0 : index
    %c0_32 = arith.constant 0 : index
    %92 = vector.load %arg3[%c0_31, %c0_32] : memref<128x512xbf16, #tpu.memory_space<vmem>>, vector<128x512xbf16>
    %cst_33 = arith.constant dense<0.000000e+00> : vector<8x512xf32>
    %93 = tpu.matmul %91, %92, %cst_33 {dimension_numbers = #tpu.dot_dimension_numbers<[1], [0], [0], [1], [0, 0, 1, 1], [], []>} : vector<8x128xbf16>, vector<128x512xbf16>, vector<8x512xf32> -> vector<8x512xf32>
    %94 = arith.addf %90, %93 : vector<8x512xf32>
    %95 = vector.extract_strided_slice %94 {offsets = [0, 0], sizes = [8, 384], strides = [1, 1]} : vector<8x512xf32> to vector<8x384xf32>
    %96 = arith.negf %95 : vector<8x384xf32>
    %97 = math.exp %96 : vector<8x384xf32>
    %cst_34 = arith.constant 1.000000e+00 : f32
    %98 = vector.broadcast %cst_34 : f32 to vector<8x384xf32>
    %99 = arith.addf %98, %97 : vector<8x384xf32>
    %100 = arith.divf %98, %99 : vector<8x384xf32>
    %101 = vector.extract_strided_slice %100 {offsets = [0, 0], sizes = [8, 128], strides = [1, 1]} : vector<8x384xf32> to vector<8x128xf32>
    %102 = vector.extract_strided_slice %100 {offsets = [0, 128], sizes = [8, 128], strides = [1, 1]} : vector<8x384xf32> to vector<8x128xf32>
    %103 = vector.extract_strided_slice %100 {offsets = [0, 256], sizes = [8, 128], strides = [1, 1]} : vector<8x384xf32> to vector<8x128xf32>
    %104 = vector.extract_strided_slice %94 {offsets = [0, 384], sizes = [8, 128], strides = [1, 1]} : vector<8x512xf32> to vector<8x128xf32>
    %105 = math.tanh %104 : vector<8x128xf32>
    %106 = arith.mulf %102, %82 : vector<8x128xf32>
    %107 = arith.mulf %101, %105 : vector<8x128xf32>
    %108 = arith.addf %106, %107 : vector<8x128xf32>
    %109 = math.tanh %108 : vector<8x128xf32>
    %110 = arith.mulf %103, %109 : vector<8x128xf32>
    %111 = arith.index_cast %88 : i32 to index
    %c0_35 = arith.constant 0 : index
    %112 = vector.load %arg9[%111, %c0_35] : memref<64x128xf32, #tpu.memory_space<vmem>>, vector<8x128xf32>
    tpu.vector_store %arg9[%111, %c0_35], %110 {strides = array<i32>} : memref<64x128xf32, #tpu.memory_space<vmem>>, vector<8x128xf32>,
    %c4_i32 = arith.constant 4 : i32
    %c8_i32_36 = arith.constant 8 : i32
    %113 = arith.muli %c4_i32, %c8_i32_36 : i32
    %114 = tpu.assume_multiple %113, 8 : i32
    %115 = arith.index_cast %114 : i32 to index
    %c0_37 = arith.constant 0 : index
    %116 = vector.load %arg8[%115, %c0_37] : memref<64x512xf32, #tpu.memory_space<vmem>>, vector<8x512xf32>
    %117 = arith.truncf %110 : vector<8x128xf32> to vector<8x128xbf16>
    %c0_38 = arith.constant 0 : index
    %c0_39 = arith.constant 0 : index
    %118 = vector.load %arg3[%c0_38, %c0_39] : memref<128x512xbf16, #tpu.memory_space<vmem>>, vector<128x512xbf16>
    %cst_40 = arith.constant dense<0.000000e+00> : vector<8x512xf32>
    %119 = tpu.matmul %117, %118, %cst_40 {dimension_numbers = #tpu.dot_dimension_numbers<[1], [0], [0], [1], [0, 0, 1, 1], [], []>} : vector<8x128xbf16>, vector<128x512xbf16>, vector<8x512xf32> -> vector<8x512xf32>
    %120 = arith.addf %116, %119 : vector<8x512xf32>
    %121 = vector.extract_strided_slice %120 {offsets = [0, 0], sizes = [8, 384], strides = [1, 1]} : vector<8x512xf32> to vector<8x384xf32>
    %122 = arith.negf %121 : vector<8x384xf32>
    %123 = math.exp %122 : vector<8x384xf32>
    %cst_41 = arith.constant 1.000000e+00 : f32
    %124 = vector.broadcast %cst_41 : f32 to vector<8x384xf32>
    %125 = arith.addf %124, %123 : vector<8x384xf32>
    %126 = arith.divf %124, %125 : vector<8x384xf32>
    %127 = vector.extract_strided_slice %126 {offsets = [0, 0], sizes = [8, 128], strides = [1, 1]} : vector<8x384xf32> to vector<8x128xf32>
    %128 = vector.extract_strided_slice %126 {offsets = [0, 128], sizes = [8, 128], strides = [1, 1]} : vector<8x384xf32> to vector<8x128xf32>
    %129 = vector.extract_strided_slice %126 {offsets = [0, 256], sizes = [8, 128], strides = [1, 1]} : vector<8x384xf32> to vector<8x128xf32>
    %130 = vector.extract_strided_slice %120 {offsets = [0, 384], sizes = [8, 128], strides = [1, 1]} : vector<8x512xf32> to vector<8x128xf32>
    %131 = math.tanh %130 : vector<8x128xf32>
    %132 = arith.mulf %128, %108 : vector<8x128xf32>
    %133 = arith.mulf %127, %131 : vector<8x128xf32>
    %134 = arith.addf %132, %133 : vector<8x128xf32>
    %135 = math.tanh %134 : vector<8x128xf32>
    %136 = arith.mulf %129, %135 : vector<8x128xf32>
    %137 = arith.index_cast %114 : i32 to index
    %c0_42 = arith.constant 0 : index
    %138 = vector.load %arg9[%137, %c0_42] : memref<64x128xf32, #tpu.memory_space<vmem>>, vector<8x128xf32>
    tpu.vector_store %arg9[%137, %c0_42], %136 {strides = array<i32>} : memref<64x128xf32, #tpu.memory_space<vmem>>, vector<8x128xf32>,
    %c5_i32 = arith.constant 5 : i32
    %c8_i32_43 = arith.constant 8 : i32
    %139 = arith.muli %c5_i32, %c8_i32_43 : i32
    %140 = tpu.assume_multiple %139, 8 : i32
    %141 = arith.index_cast %140 : i32 to index
    %c0_44 = arith.constant 0 : index
    %142 = vector.load %arg8[%141, %c0_44] : memref<64x512xf32, #tpu.memory_space<vmem>>, vector<8x512xf32>
    %143 = arith.truncf %136 : vector<8x128xf32> to vector<8x128xbf16>
    %c0_45 = arith.constant 0 : index
    %c0_46 = arith.constant 0 : index
    %144 = vector.load %arg3[%c0_45, %c0_46] : memref<128x512xbf16, #tpu.memory_space<vmem>>, vector<128x512xbf16>
    %cst_47 = arith.constant dense<0.000000e+00> : vector<8x512xf32>
    %145 = tpu.matmul %143, %144, %cst_47 {dimension_numbers = #tpu.dot_dimension_numbers<[1], [0], [0], [1], [0, 0, 1, 1], [], []>} : vector<8x128xbf16>, vector<128x512xbf16>, vector<8x512xf32> -> vector<8x512xf32>
    %146 = arith.addf %142, %145 : vector<8x512xf32>
    %147 = vector.extract_strided_slice %146 {offsets = [0, 0], sizes = [8, 384], strides = [1, 1]} : vector<8x512xf32> to vector<8x384xf32>
    %148 = arith.negf %147 : vector<8x384xf32>
    %149 = math.exp %148 : vector<8x384xf32>
    %cst_48 = arith.constant 1.000000e+00 : f32
    %150 = vector.broadcast %cst_48 : f32 to vector<8x384xf32>
    %151 = arith.addf %150, %149 : vector<8x384xf32>
    %152 = arith.divf %150, %151 : vector<8x384xf32>
    %153 = vector.extract_strided_slice %152 {offsets = [0, 0], sizes = [8, 128], strides = [1, 1]} : vector<8x384xf32> to vector<8x128xf32>
    %154 = vector.extract_strided_slice %152 {offsets = [0, 128], sizes = [8, 128], strides = [1, 1]} : vector<8x384xf32> to vector<8x128xf32>
    %155 = vector.extract_strided_slice %152 {offsets = [0, 256], sizes = [8, 128], strides = [1, 1]} : vector<8x384xf32> to vector<8x128xf32>
    %156 = vector.extract_strided_slice %146 {offsets = [0, 384], sizes = [8, 128], strides = [1, 1]} : vector<8x512xf32> to vector<8x128xf32>
    %157 = math.tanh %156 : vector<8x128xf32>
    %158 = arith.mulf %154, %134 : vector<8x128xf32>
    %159 = arith.mulf %153, %157 : vector<8x128xf32>
    %160 = arith.addf %158, %159 : vector<8x128xf32>
    %161 = math.tanh %160 : vector<8x128xf32>
    %162 = arith.mulf %155, %161 : vector<8x128xf32>
    %163 = arith.index_cast %140 : i32 to index
    %c0_49 = arith.constant 0 : index
    %164 = vector.load %arg9[%163, %c0_49] : memref<64x128xf32, #tpu.memory_space<vmem>>, vector<8x128xf32>
    tpu.vector_store %arg9[%163, %c0_49], %162 {strides = array<i32>} : memref<64x128xf32, #tpu.memory_space<vmem>>, vector<8x128xf32>,
    %c6_i32 = arith.constant 6 : i32
    %c8_i32_50 = arith.constant 8 : i32
    %165 = arith.muli %c6_i32, %c8_i32_50 : i32
    %166 = tpu.assume_multiple %165, 8 : i32
    %167 = arith.index_cast %166 : i32 to index
    %c0_51 = arith.constant 0 : index
    %168 = vector.load %arg8[%167, %c0_51] : memref<64x512xf32, #tpu.memory_space<vmem>>, vector<8x512xf32>
    %169 = arith.truncf %162 : vector<8x128xf32> to vector<8x128xbf16>
    %c0_52 = arith.constant 0 : index
    %c0_53 = arith.constant 0 : index
    %170 = vector.load %arg3[%c0_52, %c0_53] : memref<128x512xbf16, #tpu.memory_space<vmem>>, vector<128x512xbf16>
    %cst_54 = arith.constant dense<0.000000e+00> : vector<8x512xf32>
    %171 = tpu.matmul %169, %170, %cst_54 {dimension_numbers = #tpu.dot_dimension_numbers<[1], [0], [0], [1], [0, 0, 1, 1], [], []>} : vector<8x128xbf16>, vector<128x512xbf16>, vector<8x512xf32> -> vector<8x512xf32>
    %172 = arith.addf %168, %171 : vector<8x512xf32>
    %173 = vector.extract_strided_slice %172 {offsets = [0, 0], sizes = [8, 384], strides = [1, 1]} : vector<8x512xf32> to vector<8x384xf32>
    %174 = arith.negf %173 : vector<8x384xf32>
    %175 = math.exp %174 : vector<8x384xf32>
    %cst_55 = arith.constant 1.000000e+00 : f32
    %176 = vector.broadcast %cst_55 : f32 to vector<8x384xf32>
    %177 = arith.addf %176, %175 : vector<8x384xf32>
    %178 = arith.divf %176, %177 : vector<8x384xf32>
    %179 = vector.extract_strided_slice %178 {offsets = [0, 0], sizes = [8, 128], strides = [1, 1]} : vector<8x384xf32> to vector<8x128xf32>
    %180 = vector.extract_strided_slice %178 {offsets = [0, 128], sizes = [8, 128], strides = [1, 1]} : vector<8x384xf32> to vector<8x128xf32>
    %181 = vector.extract_strided_slice %178 {offsets = [0, 256], sizes = [8, 128], strides = [1, 1]} : vector<8x384xf32> to vector<8x128xf32>
    %182 = vector.extract_strided_slice %172 {offsets = [0, 384], sizes = [8, 128], strides = [1, 1]} : vector<8x512xf32> to vector<8x128xf32>
    %183 = math.tanh %182 : vector<8x128xf32>
    %184 = arith.mulf %180, %160 : vector<8x128xf32>
    %185 = arith.mulf %179, %183 : vector<8x128xf32>
    %186 = arith.addf %184, %185 : vector<8x128xf32>
    %187 = math.tanh %186 : vector<8x128xf32>
    %188 = arith.mulf %181, %187 : vector<8x128xf32>
    %189 = arith.index_cast %166 : i32 to index
    %c0_56 = arith.constant 0 : index
    %190 = vector.load %arg9[%189, %c0_56] : memref<64x128xf32, #tpu.memory_space<vmem>>, vector<8x128xf32>
    tpu.vector_store %arg9[%189, %c0_56], %188 {strides = array<i32>} : memref<64x128xf32, #tpu.memory_space<vmem>>, vector<8x128xf32>,
    %c7_i32 = arith.constant 7 : i32
    %c8_i32_57 = arith.constant 8 : i32
    %191 = arith.muli %c7_i32, %c8_i32_57 : i32
    %192 = tpu.assume_multiple %191, 8 : i32
    %193 = arith.index_cast %192 : i32 to index
    %c0_58 = arith.constant 0 : index
    %194 = vector.load %arg8[%193, %c0_58] : memref<64x512xf32, #tpu.memory_space<vmem>>, vector<8x512xf32>
    %195 = arith.truncf %188 : vector<8x128xf32> to vector<8x128xbf16>
    %c0_59 = arith.constant 0 : index
    %c0_60 = arith.constant 0 : index
    %196 = vector.load %arg3[%c0_59, %c0_60] : memref<128x512xbf16, #tpu.memory_space<vmem>>, vector<128x512xbf16>
    %cst_61 = arith.constant dense<0.000000e+00> : vector<8x512xf32>
    %197 = tpu.matmul %195, %196, %cst_61 {dimension_numbers = #tpu.dot_dimension_numbers<[1], [0], [0], [1], [0, 0, 1, 1], [], []>} : vector<8x128xbf16>, vector<128x512xbf16>, vector<8x512xf32> -> vector<8x512xf32>
    %198 = arith.addf %194, %197 : vector<8x512xf32>
    %199 = vector.extract_strided_slice %198 {offsets = [0, 0], sizes = [8, 384], strides = [1, 1]} : vector<8x512xf32> to vector<8x384xf32>
    %200 = arith.negf %199 : vector<8x384xf32>
    %201 = math.exp %200 : vector<8x384xf32>
    %cst_62 = arith.constant 1.000000e+00 : f32
    %202 = vector.broadcast %cst_62 : f32 to vector<8x384xf32>
    %203 = arith.addf %202, %201 : vector<8x384xf32>
    %204 = arith.divf %202, %203 : vector<8x384xf32>
    %205 = vector.extract_strided_slice %204 {offsets = [0, 0], sizes = [8, 128], strides = [1, 1]} : vector<8x384xf32> to vector<8x128xf32>
    %206 = vector.extract_strided_slice %204 {offsets = [0, 128], sizes = [8, 128], strides = [1, 1]} : vector<8x384xf32> to vector<8x128xf32>
    %207 = vector.extract_strided_slice %204 {offsets = [0, 256], sizes = [8, 128], strides = [1, 1]} : vector<8x384xf32> to vector<8x128xf32>
    %208 = vector.extract_strided_slice %198 {offsets = [0, 384], sizes = [8, 128], strides = [1, 1]} : vector<8x512xf32> to vector<8x128xf32>
    %209 = math.tanh %208 : vector<8x128xf32>
    %210 = arith.mulf %206, %186 : vector<8x128xf32>
    %211 = arith.mulf %205, %209 : vector<8x128xf32>
    %212 = arith.addf %210, %211 : vector<8x128xf32>
    %213 = math.tanh %212 : vector<8x128xf32>
    %214 = arith.mulf %207, %213 : vector<8x128xf32>
    %215 = arith.index_cast %192 : i32 to index
    %c0_63 = arith.constant 0 : index
    %216 = vector.load %arg9[%215, %c0_63] : memref<64x128xf32, #tpu.memory_space<vmem>>, vector<8x128xf32>
    tpu.vector_store %arg9[%215, %c0_63], %214 {strides = array<i32>} : memref<64x128xf32, #tpu.memory_space<vmem>>, vector<8x128xf32>,
    %c8_i32_64 = arith.constant 8 : i32
    %c0_65 = arith.constant 0 : index
    %c0_66 = arith.constant 0 : index
    %217 = vector.load %arg9[%c0_65, %c0_66] : memref<64x128xf32, #tpu.memory_space<vmem>>, vector<64x128xf32>
    %c0_67 = arith.constant 0 : index
    %c0_68 = arith.constant 0 : index
    %218 = vector.load %arg5[%c0_67, %c0_68] : memref<1x128xf32, #tpu.memory_space<vmem>>, vector<1x128xf32>
    %219 = vector.broadcast %218 : vector<1x128xf32> to vector<64x128xf32>
    %220 = arith.mulf %217, %219 : vector<64x128xf32>
    %cst_69 = arith.constant dense<0.000000e+00> : vector<64xf32>
    %221 = vector.multi_reduction <add>, %220, %cst_69 [1] : vector<64x128xf32> to vector<64xf32>
    %222 = vector.shape_cast %221 : vector<64xf32> to vector<64x1xf32>
    %c0_70 = arith.constant 0 : index
    %c0_71 = arith.constant 0 : index
    %223 = vector.load %arg6[%c0_70, %c0_71] : memref<1x1xf32, #tpu.memory_space<vmem>>, vector<1x1xf32>
    %224 = vector.broadcast %223 : vector<1x1xf32> to vector<64x1xf32>
    %225 = arith.addf %222, %224 : vector<64x1xf32>
    %c0_72 = arith.constant 0 : index
    %c0_73 = arith.constant 0 : index
    %226 = vector.load %arg7[%c0_72, %c0_73] : memref<64x1xf32, #tpu.memory_space<vmem>>, vector<64x1xf32>
    tpu.vector_store %arg7[%c0_72, %c0_73], %225 {strides = array<i32>} : memref<64x1xf32, #tpu.memory_space<vmem>>, vector<64x1xf32>,
    return
  }
  func.func @transform_0(%arg0: i32) -> (i32, i32) {
    %c0_i32 = arith.constant 0 : i32
    %c0_i32_0 = arith.constant 0 : i32
    return %arg0, %c0_i32 : i32, i32
  }
  func.func @transform_1(%arg0: i32) -> (i32, i32) {
    %c0_i32 = arith.constant 0 : i32
    %c0_i32_0 = arith.constant 0 : i32
    %c0_i32_1 = arith.constant 0 : i32
    return %c0_i32, %c0_i32_0 : i32, i32
  }
  func.func @transform_2(%arg0: i32) -> (i32, i32) {
    %c0_i32 = arith.constant 0 : i32
    %c0_i32_0 = arith.constant 0 : i32
    %c0_i32_1 = arith.constant 0 : i32
    return %c0_i32, %c0_i32_0 : i32, i32
  }
  func.func @transform_3(%arg0: i32) -> (i32, i32) {
    %c0_i32 = arith.constant 0 : i32
    %c0_i32_0 = arith.constant 0 : i32
    %c0_i32_1 = arith.constant 0 : i32
    return %c0_i32, %c0_i32_0 : i32, i32
  }
  func.func @transform_4(%arg0: i32) -> (i32, i32) {
    %c0_i32 = arith.constant 0 : i32
    %c0_i32_0 = arith.constant 0 : i32
    %c0_i32_1 = arith.constant 0 : i32
    return %c0_i32, %c0_i32_0 : i32, i32
  }
  func.func @transform_5(%arg0: i32) -> (i32, i32) {
    %c0_i32 = arith.constant 0 : i32
    %c0_i32_0 = arith.constant 0 : i32
    %c0_i32_1 = arith.constant 0 : i32
    return %c0_i32, %c0_i32_0 : i32, i32
  }
  func.func @transform_6(%arg0: i32) -> (i32, i32) {
    %c0_i32 = arith.constant 0 : i32
    %c0_i32_0 = arith.constant 0 : i32
    return %arg0, %c0_i32 : i32, i32
  }
}

</mosaic_0001>

<llo_original>
// kernel: tpu_custom_call.1
$region0: #{tpu_custom_call.1}
  #allocation0 [shape = 'u32[]', space=smem, size = 0x4, offset = 0x4, fixed_abs, tag = 'smem constant byte address 0x4 - core index']
  #allocation1 [shape = 'u32[144,128]{1,0:T(1,128)}', space=vmem, size = 0x12000, scoped, tag = 'internal scratch']
  #allocation2 [shape = 'f32[64,512]{1,0:T(8,128)}', space=vmem, size = 0x20000, scoped, tag = 'scratch operand']
  #allocation3 [shape = 'f32[64,128]{1,0:T(8,128)}', space=vmem, size = 0x8000, scoped, tag = 'scratch operand']
  #allocation4 [shape = 'f32[1,1]{1,0:T(1,128)S(1)}', space=vmem, size = 0x200, scoped, tag = 'scoped memory for tpu_custom_call.1']
  %s0 = inlined_call_operand.vmem [shape: f32[64,4], index: 0, kind: input, shape index: {}]
  %s1 = inlined_call_operand.vmem [shape: f32[4,512], index: 1, kind: input, shape index: {}]
  %s2 = inlined_call_operand.hbm [shape: bf16[128,512], index: 2, kind: input, shape index: {}]
  %s3 = inlined_call_operand.vmem [shape: f32[1,512], index: 3, kind: input, shape index: {}]
  %s4 = inlined_call_operand.vmem [shape: f32[1,128], index: 4, kind: input, shape index: {}]
  %s5 = inlined_call_operand.<no memory space> [shape: f32[1,1], index: 5, kind: input, shape index: {}]
  %s6 = inlined_call_operand.vmem [shape: f32[64,1], index: 6, kind: output, shape index: {}]
  %s7 = sld [smem:[#allocation0]]
  $region38: #{tpu_custom_call.1} parent=0
    _
  %s9 = ssub.s32 1, %s7
  %s10 = scalar_select 0, %s9, %s7
  %v11 = vstv %s5
  %12 = vst [vmem:[#allocation4] sm:$0x1] %v11
  $region1: #{tpu_custom_call.1} parent=0
    #allocation5 [shape = 'u8[131072]{0}', space=vmem, size = 0x20000, scoped, tag = 'input window, operand 2, single buffered']
    #allocation6 [shape = 's32[1]{0}', space=sflag, size = 0x4, scoped, tag = 'scoped memory for tpu_custom_call.1']
    %13 = vsyncpa [#allocation6], 0
    // Predicated region
    $region2: #{tpu_custom_call.1} parent=1 // pred_check
      _
    $region3: #{tpu_custom_call.1} parent=1 // pred_check_branch
      %15 = sbr.rel (0) target = $region5
    $region4: #{tpu_custom_call.1} parent=1 // pred_region
      _
    $region5: #{tpu_custom_call.1} parent=1 // pred_fallthru
      _
    // Predicated region
    $region6: #{tpu_custom_call.1} parent=1 // pred_check
      _
    $region7: #{tpu_custom_call.1} parent=1 // pred_check_branch
      %17 = sbr.rel (0) target = $region9
    $region8: #{tpu_custom_call.1} parent=1 // pred_region
      _
    $region9: #{tpu_custom_call.1} parent=1 // pred_fallthru
      _
    // Predicated region
    $region10: #{tpu_custom_call.1} parent=1 // pred_check
      _
    $region11: #{tpu_custom_call.1} parent=1 // pred_check_branch
      %19 = sbr.rel (0) target = $region13
    $region12: #{tpu_custom_call.1} parent=1 // pred_region
      %s21 = ssub.s32 4096, 4096
      %22 = vsyncadd [#allocation6], %s21
      %s23 = sshll.u32 [#allocation5], 4
      %s24 = int_to_ptr.vmem [resolvable:$true] %s23
      %29 = dma.hbm_to_vmem [thread:$0]  %s2, 4096, %s24, [#allocation6], 256, 256, 16
    $region13: #{tpu_custom_call.1} parent=1 // pred_fallthru
      _
    // Predicated region
    $region14: #{tpu_custom_call.1} parent=1 // pred_check
      _
    $region15: #{tpu_custom_call.1} parent=1 // pred_check_branch
      %31 = sbr.rel (0) target = $region17
    $region16: #{tpu_custom_call.1} parent=1 // pred_region
      _
    $region17: #{tpu_custom_call.1} parent=1 // pred_fallthru
      _
    // Predicated region
    $region18: #{tpu_custom_call.1} parent=1 // pred_check
      _
    $region19: #{tpu_custom_call.1} parent=1 // pred_check_branch
      %33 = sbr.rel (0) target = $region21
    $region20: #{tpu_custom_call.1} parent=1 // pred_region
      _
    $region21: #{tpu_custom_call.1} parent=1 // pred_fallthru
      _
    // Predicated region
    $region22: #{tpu_custom_call.1} parent=1 // pred_check
      _
    $region23: #{tpu_custom_call.1} parent=1 // pred_check_branch
      %35 = sbr.rel (0) target = $region25
    $region24: #{tpu_custom_call.1} parent=1 // pred_region
      _
    $region25: #{tpu_custom_call.1} parent=1 // pred_fallthru
      _
    // Predicated region
    $region26: #{tpu_custom_call.1} parent=1 // pred_check
      _
    $region27: #{tpu_custom_call.1} parent=1 // pred_check_branch
      %37 = sbr.rel (0) target = $region29
    $region28: #{tpu_custom_call.1} parent=1 // pred_region
      %38 = dma.done [#allocation6], 4096
    $region29: #{tpu_custom_call.1} parent=1 // pred_fallthru
      _
    %v40 = vld [vmem:[%s0] sm:$0xff]
    %v41 = vld [vmem:[%s0 + $0x8] sm:$0xff]
    %v42 = vld [vmem:[%s0 + $0x10] sm:$0xff]
    %v43 = vld [vmem:[%s0 + $0x18] sm:$0xff]
    %v44 = vld [vmem:[%s0 + $0x20] sm:$0xff]
    %v45 = vld [vmem:[%s0 + $0x28] sm:$0xff]
    %v46 = vld [vmem:[%s0 + $0x30] sm:$0xff]
    %v47 = vld [vmem:[%s0 + $0x38] sm:$0xff]
    %v48 = vld [vmem:[%s1] sm:$0xff]
    %v49 = vld [vmem:[%s1 + $0x8] sm:$0xff]
    %v50 = vld [vmem:[%s3] sm:$0xf]
    %v52 = vlaneseq
    %v53 = vshrl.u32 %v52, 7
    %v54 = vsub.s32 0, %v53
    %v55 = vrot.slane %v50, %v54
    %v56 = vlaneseq
    %v57 = vshrl.u32 %v56, 7
    %v58 = vsub.s32 1, %v57
    %v59 = vrot.slane %v50, %v58
    %v60 = vlaneseq
    %v61 = vshrl.u32 %v60, 7
    %v62 = vsub.s32 2, %v61
    %v63 = vrot.slane %v50, %v62
    %v64 = vlaneseq
    %v65 = vshrl.u32 %v64, 7
    %v66 = vsub.s32 3, %v65
    %v67 = vrot.slane %v50, %v66
    %v74 = vcombine.high %v48, %v48
    %v75 = vcombine.high %v49, %v49
    %vm76 = vcmask 31744
    %v78 = vsel %vm76, %v40, 0
    %v81 = vsel %vm76, %v41, 0
    %v84 = vsel %vm76, %v42, 0
    %v87 = vsel %vm76, %v43, 0
    %v90 = vsel %vm76, %v44, 0
    %v93 = vsel %vm76, %v45, 0
    %v96 = vsel %vm76, %v46, 0
    %v99 = vsel %vm76, %v47, 0
    %vm101 = vcmask 1043456
    %v102 = vsel %vm101, %v48, 0
    %v104 = vsel %vm101, %v74, 0
    %v106 = vsel %vm101, %v49, 0
    %v108 = vsel %vm101, %v75, 0
    %110 = vmatprep.subr.mxu0 0.0
    %111 = vmatpush1.msra.mxu0 0.0
    %112 = vmatprep.subr.mxu0 0.0
    %113 = vmatpush1.msra.mxu0 0.0
    %114 = vmatprep.subr.mxu0 0.0
    %115 = vmatpush1.msra.mxu0 0.0
    %116 = vmatprep.subr.mxu0 0.0
    %117 = vmatpush1.msra.mxu0 0.0
    %118 = vmatprep.subr.mxu0 0.0
    %119 = vmatpush1.msra.mxu0 0.0
    %120 = vmatprep.subr.mxu0 0.0
    %121 = vmatpush1.msra.mxu0 0.0
    %122 = vmatprep.subr.mxu0 0.0
    %123 = vmatpush1.msra.mxu0 0.0
    %124 = vmatprep.subr.mxu0 0.0
    %125 = vmatpush1.msra.mxu0 0.0
    %126 = vmatprep.subr.mxu0 0.0
    %127 = vmatpush1.msra.mxu0 0.0
    %128 = vmatprep.subr.mxu0 0.0
    %129 = vmatpush1.msra.mxu0 0.0
    %130 = vmatprep.subr.mxu0 0.0
    %131 = vmatpush1.msra.mxu0 0.0
    %132 = vmatprep.subr.mxu0 0.0
    %133 = vmatpush1.msra.mxu0 0.0
    %134 = vmatprep.subr.mxu0 0.0
    %135 = vmatpush1.msra.mxu0 0.0
    %136 = vmatprep.subr.mxu0 0.0
    %137 = vmatpush1.msra.mxu0 0.0
    %138 = vmatprep.subr.mxu0 0.0
    %139 = vmatpush1.msra.mxu0 0.0
    %140 = vmatprep.subr.mxu0 %v104
    %141 = vmatpush1.msra.mxu0 %v102
    %142 = vmatprep.subr.mxu0 0.0
    %143 = vmatpush2.msra.mxu0 0.0
    %144 = vmatprep.subr.mxu0 0.0
    %145 = vmatpush2.msra.mxu0 0.0
    %146 = vmatprep.subr.mxu0 0.0
    %147 = vmatpush2.msra.mxu0 0.0
    %148 = vmatprep.subr.mxu0 0.0
    %149 = vmatpush2.msra.mxu0 0.0
    %150 = vmatprep.subr.mxu0 0.0
    %151 = vmatpush2.msra.mxu0 0.0
    %152 = vmatprep.subr.mxu0 0.0
    %153 = vmatpush2.msra.mxu0 0.0
    %154 = vmatprep.subr.mxu0 0.0
    %155 = vmatpush2.msra.mxu0 0.0
    %156 = vmatprep.subr.mxu0 0.0
    %157 = vmatpush2.msra.mxu0 0.0
    %158 = vmatprep.subr.mxu0 0.0
    %159 = vmatpush2.msra.mxu0 0.0
    %160 = vmatprep.subr.mxu0 0.0
    %161 = vmatpush2.msra.mxu0 0.0
    %162 = vmatprep.subr.mxu0 0.0
    %163 = vmatpush2.msra.mxu0 0.0
    %164 = vmatprep.subr.mxu0 0.0
    %165 = vmatpush2.msra.mxu0 0.0
    %166 = vmatprep.subr.mxu0 0.0
    %167 = vmatpush2.msra.mxu0 0.0
    %168 = vmatprep.subr.mxu0 0.0
    %169 = vmatpush2.msra.mxu0 0.0
    %170 = vmatprep.subr.mxu0 0.0
    %171 = vmatpush2.msra.mxu0 0.0
    %172 = vmatprep.subr.mxu0 0.0
    %173 = vmatpush2.msra.mxu0 0.0
    %174 = vmatprep.mubr.f32.mxu0 0.0
    %175 = vmatmul.mubr.f32.gmra.mxu0 %v78
    %v176 = vpop.f32.mrf.mxu0
    %v177 = vadd.f32 %v55, %v176
    %v178 = vpop.f32.mrf.mxu0
    %v179 = vadd.f32 %v59, %v178
    %180 = vmatprep.mubr.f32.mxu0 0.0
    %181 = vmatmul.mubr.f32.gmra.mxu0 %v81
    %v182 = vpop.f32.mrf.mxu0
    %v183 = vadd.f32 %v55, %v182
    %v184 = vpop.f32.mrf.mxu0
    %v185 = vadd.f32 %v59, %v184
    %186 = vmatprep.mubr.f32.mxu0 0.0
    %187 = vmatmul.mubr.f32.gmra.mxu0 %v84
    %v188 = vpop.f32.mrf.mxu0
    %v189 = vadd.f32 %v55, %v188
    %v190 = vpop.f32.mrf.mxu0
    %v191 = vadd.f32 %v59, %v190
    %192 = vmatprep.mubr.f32.mxu0 0.0
    %193 = vmatmul.mubr.f32.gmra.mxu0 %v87
    %v194 = vpop.f32.mrf.mxu0
    %v195 = vadd.f32 %v55, %v194
    %v196 = vpop.f32.mrf.mxu0
    %v197 = vadd.f32 %v59, %v196
    %198 = vmatprep.mubr.f32.mxu0 0.0
    %199 = vmatmul.mubr.f32.gmra.mxu0 %v90
    %v200 = vpop.f32.mrf.mxu0
    %v201 = vadd.f32 %v55, %v200
    %v202 = vpop.f32.mrf.mxu0
    %v203 = vadd.f32 %v59, %v202
    %204 = vmatprep.mubr.f32.mxu0 0.0
    %205 = vmatmul.mubr.f32.gmra.mxu0 %v93
    %v206 = vpop.f32.mrf.mxu0
    %v207 = vadd.f32 %v55, %v206
    %v208 = vpop.f32.mrf.mxu0
    %v209 = vadd.f32 %v59, %v208
    %210 = vmatprep.mubr.f32.mxu0 0.0
    %211 = vmatmul.mubr.f32.gmra.mxu0 %v96
    %v212 = vpop.f32.mrf.mxu0
    %v213 = vadd.f32 %v55, %v212
    %v214 = vpop.f32.mrf.mxu0
    %v215 = vadd.f32 %v59, %v214
    %216 = vmatprep.mubr.f32.mxu0 0.0
    %217 = vmatmul.mubr.f32.gmra.mxu0 %v99
    %v218 = vpop.f32.mrf.mxu0
    %v219 = vadd.f32 %v55, %v218
    %v220 = vpop.f32.mrf.mxu0
    %v221 = vadd.f32 %v59, %v220
    %222 = vdwg.mxu0
    %223 = vmatprep.subr.mxu0 0.0
    %224 = vmatpush1.msra.mxu0 0.0
    %225 = vmatprep.subr.mxu0 0.0
    %226 = vmatpush1.msra.mxu0 0.0
    %227 = vmatprep.subr.mxu0 0.0
    %228 = vmatpush1.msra.mxu0 0.0
    %229 = vmatprep.subr.mxu0 0.0
    %230 = vmatpush1.msra.mxu0 0.0
    %231 = vmatprep.subr.mxu0 0.0
    %232 = vmatpush1.msra.mxu0 0.0
    %233 = vmatprep.subr.mxu0 0.0
    %234 = vmatpush1.msra.mxu0 0.0
    %235 = vmatprep.subr.mxu0 0.0
    %236 = vmatpush1.msra.mxu0 0.0
    %237 = vmatprep.subr.mxu0 0.0
    %238 = vmatpush1.msra.mxu0 0.0
    %239 = vmatprep.subr.mxu0 0.0
    %240 = vmatpush1.msra.mxu0 0.0
    %241 = vmatprep.subr.mxu0 0.0
    %242 = vmatpush1.msra.mxu0 0.0
    %243 = vmatprep.subr.mxu0 0.0
    %244 = vmatpush1.msra.mxu0 0.0
    %245 = vmatprep.subr.mxu0 0.0
    %246 = vmatpush1.msra.mxu0 0.0
    %247 = vmatprep.subr.mxu0 0.0
    %248 = vmatpush1.msra.mxu0 0.0
    %249 = vmatprep.subr.mxu0 0.0
    %250 = vmatpush1.msra.mxu0 0.0
    %251 = vmatprep.subr.mxu0 0.0
    %252 = vmatpush1.msra.mxu0 0.0
    %253 = vmatprep.subr.mxu0 %v108
    %254 = vmatpush1.msra.mxu0 %v106
    %255 = vmatprep.subr.mxu0 0.0
    %256 = vmatpush2.msra.mxu0 0.0
    %257 = vmatprep.subr.mxu0 0.0
    %258 = vmatpush2.msra.mxu0 0.0
    %259 = vmatprep.subr.mxu0 0.0
    %260 = vmatpush2.msra.mxu0 0.0
    %261 = vmatprep.subr.mxu0 0.0
    %262 = vmatpush2.msra.mxu0 0.0
    %263 = vmatprep.subr.mxu0 0.0
    %264 = vmatpush2.msra.mxu0 0.0
    %265 = vmatprep.subr.mxu0 0.0
    %266 = vmatpush2.msra.mxu0 0.0
    %267 = vmatprep.subr.mxu0 0.0
    %268 = vmatpush2.msra.mxu0 0.0
    %269 = vmatprep.subr.mxu0 0.0
    %270 = vmatpush2.msra.mxu0 0.0
    %271 = vmatprep.subr.mxu0 0.0
    %272 = vmatpush2.msra.mxu0 0.0
    %273 = vmatprep.subr.mxu0 0.0
    %274 = vmatpush2.msra.mxu0 0.0
    %275 = vmatprep.subr.mxu0 0.0
    %276 = vmatpush2.msra.mxu0 0.0
    %277 = vmatprep.subr.mxu0 0.0
    %278 = vmatpush2.msra.mxu0 0.0
    %279 = vmatprep.subr.mxu0 0.0
    %280 = vmatpush2.msra.mxu0 0.0
    %281 = vmatprep.subr.mxu0 0.0
    %282 = vmatpush2.msra.mxu0 0.0
    %283 = vmatprep.subr.mxu0 0.0
    %284 = vmatpush2.msra.mxu0 0.0
    %285 = vmatprep.subr.mxu0 0.0
    %286 = vmatpush2.msra.mxu0 0.0
    %287 = vmatprep.mubr.f32.mxu0 0.0
    %288 = vmatmul.mubr.f32.gmra.mxu0 %v78
    %v289 = vpop.f32.mrf.mxu0
    %v290 = vadd.f32 %v63, %v289
    %v291 = vpop.f32.mrf.mxu0
    %v292 = vadd.f32 %v67, %v291
    %293 = vmatprep.mubr.f32.mxu0 0.0
    %294 = vmatmul.mubr.f32.gmra.mxu0 %v81
    %v295 = vpop.f32.mrf.mxu0
    %v296 = vadd.f32 %v63, %v295
    %v297 = vpop.f32.mrf.mxu0
    %v298 = vadd.f32 %v67, %v297
    %299 = vmatprep.mubr.f32.mxu0 0.0
    %300 = vmatmul.mubr.f32.gmra.mxu0 %v84
    %v301 = vpop.f32.mrf.mxu0
    %v302 = vadd.f32 %v63, %v301
    %v303 = vpop.f32.mrf.mxu0
    %v304 = vadd.f32 %v67, %v303
    %305 = vmatprep.mubr.f32.mxu0 0.0
    %306 = vmatmul.mubr.f32.gmra.mxu0 %v87
    %v307 = vpop.f32.mrf.mxu0
    %v308 = vadd.f32 %v63, %v307
    %v309 = vpop.f32.mrf.mxu0
    %v310 = vadd.f32 %v67, %v309
    %311 = vmatprep.mubr.f32.mxu0 0.0
    %312 = vmatmul.mubr.f32.gmra.mxu0 %v90
    %v313 = vpop.f32.mrf.mxu0
    %v314 = vadd.f32 %v63, %v313
    %v315 = vpop.f32.mrf.mxu0
    %v316 = vadd.f32 %v67, %v315
    %317 = vmatprep.mubr.f32.mxu0 0.0
    %318 = vmatmul.mubr.f32.gmra.mxu0 %v93
    %v319 = vpop.f32.mrf.mxu0
    %v320 = vadd.f32 %v63, %v319
    %v321 = vpop.f32.mrf.mxu0
    %v322 = vadd.f32 %v67, %v321
    %323 = vmatprep.mubr.f32.mxu0 0.0
    %324 = vmatmul.mubr.f32.gmra.mxu0 %v96
    %v325 = vpop.f32.mrf.mxu0
    %v326 = vadd.f32 %v63, %v325
    %v327 = vpop.f32.mrf.mxu0
    %v328 = vadd.f32 %v67, %v327
    %329 = vmatprep.mubr.f32.mxu0 0.0
    %330 = vmatmul.mubr.f32.gmra.mxu0 %v99
    %v331 = vpop.f32.mrf.mxu0
    %v332 = vadd.f32 %v63, %v331
    %v333 = vpop.f32.mrf.mxu0
    %v334 = vadd.f32 %v67, %v333
    %335 = vdwg.mxu0
    %336 = vst [vmem:[#allocation2] sm:$0xff] %v177
    %337 = vst [vmem:[#allocation2 + $0x8] sm:$0xff] %v179
    %338 = vst [vmem:[#allocation2 + $0x10] sm:$0xff] %v290
    %339 = vst [vmem:[#allocation2 + $0x18] sm:$0xff] %v292
    %340 = vst [vmem:[#allocation2 + $0x20] sm:$0xff] %v183
    %341 = vst [vmem:[#allocation2 + $0x28] sm:$0xff] %v185
    %342 = vst [vmem:[#allocation2 + $0x30] sm:$0xff] %v296
    %343 = vst [vmem:[#allocation2 + $0x38] sm:$0xff] %v298
    %344 = vst [vmem:[#allocation2 + $0x40] sm:$0xff] %v189
    %345 = vst [vmem:[#allocation2 + $0x48] sm:$0xff] %v191
    %346 = vst [vmem:[#allocation2 + $0x50] sm:$0xff] %v302
    %347 = vst [vmem:[#allocation2 + $0x58] sm:$0xff] %v304
    %348 = vst [vmem:[#allocation2 + $0x60] sm:$0xff] %v195
    %349 = vst [vmem:[#allocation2 + $0x68] sm:$0xff] %v197
    %350 = vst [vmem:[#allocation2 + $0x70] sm:$0xff] %v308
    %351 = vst [vmem:[#allocation2 + $0x78] sm:$0xff] %v310
    %352 = vst [vmem:[#allocation2 + $0x80] sm:$0xff] %v201
    %353 = vst [vmem:[#allocation2 + $0x88] sm:$0xff] %v203
    %354 = vst [vmem:[#allocation2 + $0x90] sm:$0xff] %v314
    %355 = vst [vmem:[#allocation2 + $0x98] sm:$0xff] %v316
    %356 = vst [vmem:[#allocation2 + $0xa0] sm:$0xff] %v207
    %357 = vst [vmem:[#allocation2 + $0xa8] sm:$0xff] %v209
    %358 = vst [vmem:[#allocation2 + $0xb0] sm:$0xff] %v320
    %359 = vst [vmem:[#allocation2 + $0xb8] sm:$0xff] %v322
    %360 = vst [vmem:[#allocation2 + $0xc0] sm:$0xff] %v213
    %361 = vst [vmem:[#allocation2 + $0xc8] sm:$0xff] %v215
    %362 = vst [vmem:[#allocation2 + $0xd0] sm:$0xff] %v326
    %363 = vst [vmem:[#allocation2 + $0xd8] sm:$0xff] %v328
    %364 = vst [vmem:[#allocation2 + $0xe0] sm:$0xff] %v219
    %365 = vst [vmem:[#allocation2 + $0xe8] sm:$0xff] %v221
    %366 = vst [vmem:[#allocation2 + $0xf0] sm:$0xff] %v332
    %367 = vst [vmem:[#allocation2 + $0xf8] sm:$0xff] %v334
    %s368 = smul.u32 0, 4
    %s369 = smul.addr %s368, 8
    %s370 = scalar_lea.vmem [#allocation2], %s369
    %v371 = vld [vmem:[%s370] sm:$0xff]
    %v372 = vld [vmem:[%s370 + $0x8] sm:$0xff]
    %v373 = vld [vmem:[%s370 + $0x10] sm:$0xff]
    %v374 = vld [vmem:[%s370 + $0x18] sm:$0xff]
    %v375 = vld [vmem:[#allocation5] sm:$0xff]
    %v376 = vld [vmem:[#allocation5 + $0x8] sm:$0xff]
    %v377 = vld [vmem:[#allocation5 + $0x10] sm:$0xff]
    %v378 = vld [vmem:[#allocation5 + $0x18] sm:$0xff]
    %v379 = vld [vmem:[#allocation5 + $0x20] sm:$0xff]
    %v380 = vld [vmem:[#allocation5 + $0x28] sm:$0xff]
    %v381 = vld [vmem:[#allocation5 + $0x30] sm:$0xff]
    %v382 = vld [vmem:[#allocation5 + $0x38] sm:$0xff]
    %v383 = vld [vmem:[#allocation5 + $0x40] sm:$0xff]
    %v384 = vld [vmem:[#allocation5 + $0x48] sm:$0xff]
    %v385 = vld [vmem:[#allocation5 + $0x50] sm:$0xff]
    %v386 = vld [vmem:[#allocation5 + $0x58] sm:$0xff]
    %v387 = vld [vmem:[#allocation5 + $0x60] sm:$0xff]
    %v388 = vld [vmem:[#allocation5 + $0x68] sm:$0xff]
    %v389 = vld [vmem:[#allocation5 + $0x70] sm:$0xff]
    %v390 = vld [vmem:[#allocation5 + $0x78] sm:$0xff]
    %v391 = vld [vmem:[#allocation5 + $0x80] sm:$0xff]
    %v392 = vld [vmem:[#allocation5 + $0x88] sm:$0xff]
    %v393 = vld [vmem:[#allocation5 + $0x90] sm:$0xff]
    %v394 = vld [vmem:[#allocation5 + $0x98] sm:$0xff]
    %v395 = vld [vmem:[#allocation5 + $0xa0] sm:$0xff]
    %v396 = vld [vmem:[#allocation5 + $0xa8] sm:$0xff]
    %v397 = vld [vmem:[#allocation5 + $0xb0] sm:$0xff]
    %v398 = vld [vmem:[#allocation5 + $0xb8] sm:$0xff]
    %v399 = vld [vmem:[#allocation5 + $0xc0] sm:$0xff]
    %v400 = vld [vmem:[#allocation5 + $0xc8] sm:$0xff]
    %v401 = vld [vmem:[#allocation5 + $0xd0] sm:$0xff]
    %v402 = vld [vmem:[#allocation5 + $0xd8] sm:$0xff]
    %v403 = vld [vmem:[#allocation5 + $0xe0] sm:$0xff]
    %v404 = vld [vmem:[#allocation5 + $0xe8] sm:$0xff]
    %v405 = vld [vmem:[#allocation5 + $0xf0] sm:$0xff]
    %v406 = vld [vmem:[#allocation5 + $0xf8] sm:$0xff]
    %v439 = vunpack.c.l.b16 %v375
    %v440 = vunpack.c.h.b16 %v375
    %v441 = vunpack.c.l.b16 %v376
    %v442 = vunpack.c.h.b16 %v376
    %v443 = vunpack.c.l.b16 %v377
    %v444 = vunpack.c.h.b16 %v377
    %v445 = vunpack.c.l.b16 %v378
    %v446 = vunpack.c.h.b16 %v378
    %v447 = vunpack.c.l.b16 %v379
    %v448 = vunpack.c.h.b16 %v379
    %v449 = vunpack.c.l.b16 %v380
    %v450 = vunpack.c.h.b16 %v380
    %v451 = vunpack.c.l.b16 %v381
    %v452 = vunpack.c.h.b16 %v381
    %v453 = vunpack.c.l.b16 %v382
    %v454 = vunpack.c.h.b16 %v382
    %v455 = vunpack.c.l.b16 %v383
    %v456 = vunpack.c.h.b16 %v383
    %v457 = vunpack.c.l.b16 %v384
    %v458 = vunpack.c.h.b16 %v384
    %v459 = vunpack.c.l.b16 %v385
    %v460 = vunpack.c.h.b16 %v385
    %v461 = vunpack.c.l.b16 %v386
    %v462 = vunpack.c.h.b16 %v386
    %v463 = vunpack.c.l.b16 %v387
    %v464 = vunpack.c.h.b16 %v387
    %v465 = vunpack.c.l.b16 %v388
    %v466 = vunpack.c.h.b16 %v388
    %v467 = vunpack.c.l.b16 %v389
    %v468 = vunpack.c.h.b16 %v389
    %v469 = vunpack.c.l.b16 %v390
    %v470 = vunpack.c.h.b16 %v390
    %v471 = vunpack.c.l.b16 %v391
    %v472 = vunpack.c.h.b16 %v391
    %v473 = vunpack.c.l.b16 %v392
    %v474 = vunpack.c.h.b16 %v392
    %v475 = vunpack.c.l.b16 %v393
    %v476 = vunpack.c.h.b16 %v393
    %v477 = vunpack.c.l.b16 %v394
    %v478 = vunpack.c.h.b16 %v394
    %v479 = vunpack.c.l.b16 %v395
    %v480 = vunpack.c.h.b16 %v395
    %v481 = vunpack.c.l.b16 %v396
    %v482 = vunpack.c.h.b16 %v396
    %v483 = vunpack.c.l.b16 %v397
    %v484 = vunpack.c.h.b16 %v397
    %v485 = vunpack.c.l.b16 %v398
    %v486 = vunpack.c.h.b16 %v398
    %v487 = vunpack.c.l.b16 %v399
    %v488 = vunpack.c.h.b16 %v399
    %v489 = vunpack.c.l.b16 %v400
    %v490 = vunpack.c.h.b16 %v400
    %v491 = vunpack.c.l.b16 %v401
    %v492 = vunpack.c.h.b16 %v401
    %v493 = vunpack.c.l.b16 %v402
    %v494 = vunpack.c.h.b16 %v402
    %v495 = vunpack.c.l.b16 %v403
    %v496 = vunpack.c.h.b16 %v403
    %v497 = vunpack.c.l.b16 %v404
    %v498 = vunpack.c.h.b16 %v404
    %v499 = vunpack.c.l.b16 %v405
    %v500 = vunpack.c.h.b16 %v405
    %v501 = vunpack.c.l.b16 %v406
    %v502 = vunpack.c.h.b16 %v406
    %v503 = vpack.c.b16 %v443, %v439
    %v504 = vpack.c.b16 %v444, %v440
    %v505 = vpack.c.b16 %v445, %v441
    %v506 = vpack.c.b16 %v446, %v442
    %v507 = vpack.c.b16 %v451, %v447
    %v508 = vpack.c.b16 %v452, %v448
    %v509 = vpack.c.b16 %v453, %v449
    %v510 = vpack.c.b16 %v454, %v450
    %v511 = vpack.c.b16 %v459, %v455
    %v512 = vpack.c.b16 %v460, %v456
    %v513 = vpack.c.b16 %v461, %v457
    %v514 = vpack.c.b16 %v462, %v458
    %v515 = vpack.c.b16 %v467, %v463
    %v516 = vpack.c.b16 %v468, %v464
    %v517 = vpack.c.b16 %v469, %v465
    %v518 = vpack.c.b16 %v470, %v466
    %v519 = vpack.c.b16 %v475, %v471
    %v520 = vpack.c.b16 %v476, %v472
    %v521 = vpack.c.b16 %v477, %v473
    %v522 = vpack.c.b16 %v478, %v474
    %v523 = vpack.c.b16 %v483, %v479
    %v524 = vpack.c.b16 %v484, %v480
    %v525 = vpack.c.b16 %v485, %v481
    %v526 = vpack.c.b16 %v486, %v482
    %v527 = vpack.c.b16 %v491, %v487
    %v528 = vpack.c.b16 %v492, %v488
    %v529 = vpack.c.b16 %v493, %v489
    %v530 = vpack.c.b16 %v494, %v490
    %v531 = vpack.c.b16 %v499, %v495
    %v532 = vpack.c.b16 %v500, %v496
    %v533 = vpack.c.b16 %v501, %v497
    %v534 = vpack.c.b16 %v502, %v498
    %567 = vmatprep.subr.bf16.mxu0 %v532
    %568 = vmatpush1.bf16.msra.mxu0 %v531
    %569 = vmatprep.subr.bf16.mxu0 %v528
    %570 = vmatpush1.bf16.msra.mxu0 %v527
    %571 = vmatprep.subr.bf16.mxu0 %v524
    %572 = vmatpush1.bf16.msra.mxu0 %v523
    %573 = vmatprep.subr.bf16.mxu0 %v520
    %574 = vmatpush1.bf16.msra.mxu0 %v519
    %575 = vmatprep.subr.bf16.mxu0 %v516
    %576 = vmatpush1.bf16.msra.mxu0 %v515
    %577 = vmatprep.subr.bf16.mxu0 %v512
    %578 = vmatpush1.bf16.msra.mxu0 %v511
    %579 = vmatprep.subr.bf16.mxu0 %v508
    %580 = vmatpush1.bf16.msra.mxu0 %v507
    %581 = vmatprep.subr.bf16.mxu0 %v504
    %582 = vmatpush1.bf16.msra.mxu0 %v503
    %583 = vmatprep.subr.bf16.mxu0 0
    %584 = vmatpush2.bf16.msra.mxu0 0
    %585 = vmatprep.subr.bf16.mxu0 0
    %586 = vmatpush2.bf16.msra.mxu0 0
    %587 = vmatprep.subr.bf16.mxu0 0
    %588 = vmatpush2.bf16.msra.mxu0 0
    %589 = vmatprep.subr.bf16.mxu0 0
    %590 = vmatpush2.bf16.msra.mxu0 0
    %591 = vmatprep.subr.bf16.mxu0 0
    %592 = vmatpush2.bf16.msra.mxu0 0
    %593 = vmatprep.subr.bf16.mxu0 0
    %594 = vmatpush2.bf16.msra.mxu0 0
    %595 = vmatprep.subr.bf16.mxu0 0
    %596 = vmatpush2.bf16.msra.mxu0 0
    %597 = vmatprep.subr.bf16.mxu0 0
    %598 = vmatpush2.bf16.msra.mxu0 0
    %599 = vmatprep.mubr.bf16.mxu0 0
    %600 = vmatmul.mubr.bf16.gmra.mxu0 0
    %v601 = vpop.f32.mrf.mxu0
    %v602 = vadd.f32 0.0, %v601
    %v603 = vpop.f32.mrf.mxu0
    %v604 = vadd.f32 0.0, %v603
    %v605 = vpop.f32.mrf.mxu0
    %v606 = vpop.f32.mrf.mxu0
    %607 = vdwg.mxu0
    %608 = vmatprep.subr.bf16.mxu0 %v534
    %609 = vmatpush1.bf16.msra.mxu0 %v533
    %610 = vmatprep.subr.bf16.mxu0 %v530
    %611 = vmatpush1.bf16.msra.mxu0 %v529
    %612 = vmatprep.subr.bf16.mxu0 %v526
    %613 = vmatpush1.bf16.msra.mxu0 %v525
    %614 = vmatprep.subr.bf16.mxu0 %v522
    %615 = vmatpush1.bf16.msra.mxu0 %v521
    %616 = vmatprep.subr.bf16.mxu0 %v518
    %617 = vmatpush1.bf16.msra.mxu0 %v517
    %618 = vmatprep.subr.bf16.mxu0 %v514
    %619 = vmatpush1.bf16.msra.mxu0 %v513
    %620 = vmatprep.subr.bf16.mxu0 %v510
    %621 = vmatpush1.bf16.msra.mxu0 %v509
    %622 = vmatprep.subr.bf16.mxu0 %v506
    %623 = vmatpush1.bf16.msra.mxu0 %v505
    %624 = vmatprep.subr.bf16.mxu0 0
    %625 = vmatpush2.bf16.msra.mxu0 0
    %626 = vmatprep.subr.bf16.mxu0 0
    %627 = vmatpush2.bf16.msra.mxu0 0
    %628 = vmatprep.subr.bf16.mxu0 0
    %629 = vmatpush2.bf16.msra.mxu0 0
    %630 = vmatprep.subr.bf16.mxu0 0
    %631 = vmatpush2.bf16.msra.mxu0 0
    %632 = vmatprep.subr.bf16.mxu0 0
    %633 = vmatpush2.bf16.msra.mxu0 0
    %634 = vmatprep.subr.bf16.mxu0 0
    %635 = vmatpush2.bf16.msra.mxu0 0
    %636 = vmatprep.subr.bf16.mxu0 0
    %637 = vmatpush2.bf16.msra.mxu0 0
    %638 = vmatprep.subr.bf16.mxu0 0
    %639 = vmatpush2.bf16.msra.mxu0 0
    %640 = vmatprep.mubr.bf16.mxu0 0
    %641 = vmatmul.mubr.bf16.gmra.mxu0 0
    %v642 = vpop.f32.mrf.mxu0
    %v643 = vadd.f32 0.0, %v642
    %v644 = vpop.f32.mrf.mxu0
    %v645 = vadd.f32 0.0, %v644
    %v646 = vpop.f32.mrf.mxu0
    %v647 = vpop.f32.mrf.mxu0
    %648 = vdwg.mxu0
    %v649 = vadd.f32 %v371, %v602
    %v650 = vadd.f32 %v372, %v604
    %v651 = vadd.f32 %v373, %v643
    %v652 = vadd.f32 %v374, %v645
    %v653 = vxor.u32 %v649, 2147483648
    %v654 = vxor.u32 %v650, 2147483648
    %v655 = vxor.u32 %v651, 2147483648
    %v656 = vmul.f32 %v653, 1.442695
    %v657 = vpow.pop %v656
    %v658 = vmul.f32 %v654, 1.442695
    %v659 = vpow.pop %v658
    %v660 = vmul.f32 %v655, 1.442695
    %v661 = vpow.pop %v660
    %v662 = vadd.f32 %v657, 1.0
    %v663 = vadd.f32 %v659, 1.0
    %v664 = vadd.f32 %v661, 1.0
    %v665 = vrcp.pop %v662
    %v666 = vmul.f32 1.0, %v665
    %v667 = vrcp.pop %v663
    %v668 = vmul.f32 1.0, %v667
    %v669 = vrcp.pop %v664
    %v670 = vmul.f32 1.0, %v669
    %v671 = vtanh.pop %v652
    %v672 = vmul.f32 %v668, 0.0
    %v673 = vmul.f32 %v666, %v671
    %v674 = vadd.f32 %v672, %v673
    %v675 = vtanh.pop %v674
    %v676 = vmul.f32 %v670, %v675
    %677 = vst [vmem:[#allocation3] sm:$0xff] %v676
    %s678 = smul.u32 1, 4
    %s679 = smul.addr %s678, 8
    %s680 = scalar_lea.vmem [#allocation2], %s679
    %v681 = vld [vmem:[%s680] sm:$0xff]
    %v682 = vld [vmem:[%s680 + $0x8] sm:$0xff]
    %v683 = vld [vmem:[%s680 + $0x10] sm:$0xff]
    %v684 = vld [vmem:[%s680 + $0x18] sm:$0xff]
    %v685 = vpack.c.bf16 %v676, %v676
    %v686 = vld [vmem:[#allocation5] sm:$0xff]
    %v687 = vld [vmem:[#allocation5 + $0x8] sm:$0xff]
    %v688 = vld [vmem:[#allocation5 + $0x10] sm:$0xff]
    %v689 = vld [vmem:[#allocation5 + $0x18] sm:$0xff]
    %v690 = vld [vmem:[#allocation5 + $0x20] sm:$0xff]
    %v691 = vld [vmem:[#allocation5 + $0x28] sm:$0xff]
    %v692 = vld [vmem:[#allocation5 + $0x30] sm:$0xff]
    %v693 = vld [vmem:[#allocation5 + $0x38] sm:$0xff]
    %v694 = vld [vmem:[#allocation5 + $0x40] sm:$0xff]
    %v695 = vld [vmem:[#allocation5 + $0x48] sm:$0xff]
    %v696 = vld [vmem:[#allocation5 + $0x50] sm:$0xff]
    %v697 = vld [vmem:[#allocation5 + $0x58] sm:$0xff]
    %v698 = vld [vmem:[#allocation5 + $0x60] sm:$0xff]
    %v699 = vld [vmem:[#allocation5 + $0x68] sm:$0xff]
    %v700 = vld [vmem:[#allocation5 + $0x70] sm:$0xff]
    %v701 = vld [vmem:[#allocation5 + $0x78] sm:$0xff]
    %v702 = vld [vmem:[#allocation5 + $0x80] sm:$0xff]
    %v703 = vld [vmem:[#allocation5 + $0x88] sm:$0xff]
    %v704 = vld [vmem:[#allocation5 + $0x90] sm:$0xff]
    %v705 = vld [vmem:[#allocation5 + $0x98] sm:$0xff]
    %v706 = vld [vmem:[#allocation5 + $0xa0] sm:$0xff]
    %v707 = vld [vmem:[#allocation5 + $0xa8] sm:$0xff]
    %v708 = vld [vmem:[#allocation5 + $0xb0] sm:$0xff]
    %v709 = vld [vmem:[#allocation5 + $0xb8] sm:$0xff]
    %v710 = vld [vmem:[#allocation5 + $0xc0] sm:$0xff]
    %v711 = vld [vmem:[#allocation5 + $0xc8] sm:$0xff]
    %v712 = vld [vmem:[#allocation5 + $0xd0] sm:$0xff]
    %v713 = vld [vmem:[#allocation5 + $0xd8] sm:$0xff]
    %v714 = vld [vmem:[#allocation5 + $0xe0] sm:$0xff]
    %v715 = vld [vmem:[#allocation5 + $0xe8] sm:$0xff]
    %v716 = vld [vmem:[#allocation5 + $0xf0] sm:$0xff]
    %v717 = vld [vmem:[#allocation5 + $0xf8] sm:$0xff]
    %v750 = vunpack.c.l.b16 %v686
    %v751 = vunpack.c.h.b16 %v686
    %v752 = vunpack.c.l.b16 %v687
    %v753 = vunpack.c.h.b16 %v687
    %v754 = vunpack.c.l.b16 %v688
    %v755 = vunpack.c.h.b16 %v688
    %v756 = vunpack.c.l.b16 %v689
    %v757 = vunpack.c.h.b16 %v689
    %v758 = vunpack.c.l.b16 %v690
    %v759 = vunpack.c.h.b16 %v690
    %v760 = vunpack.c.l.b16 %v691
    %v761 = vunpack.c.h.b16 %v691
    %v762 = vunpack.c.l.b16 %v692
    %v763 = vunpack.c.h.b16 %v692
    %v764 = vunpack.c.l.b16 %v693
    %v765 = vunpack.c.h.b16 %v693
    %v766 = vunpack.c.l.b16 %v694
    %v767 = vunpack.c.h.b16 %v694
    %v768 = vunpack.c.l.b16 %v695
    %v769 = vunpack.c.h.b16 %v695
    %v770 = vunpack.c.l.b16 %v696
    %v771 = vunpack.c.h.b16 %v696
    %v772 = vunpack.c.l.b16 %v697
    %v773 = vunpack.c.h.b16 %v697
    %v774 = vunpack.c.l.b16 %v698
    %v775 = vunpack.c.h.b16 %v698
    %v776 = vunpack.c.l.b16 %v699
    %v777 = vunpack.c.h.b16 %v699
    %v778 = vunpack.c.l.b16 %v700
    %v779 = vunpack.c.h.b16 %v700
    %v780 = vunpack.c.l.b16 %v701
    %v781 = vunpack.c.h.b16 %v701
    %v782 = vunpack.c.l.b16 %v702
    %v783 = vunpack.c.h.b16 %v702
    %v784 = vunpack.c.l.b16 %v703
    %v785 = vunpack.c.h.b16 %v703
    %v786 = vunpack.c.l.b16 %v704
    %v787 = vunpack.c.h.b16 %v704
    %v788 = vunpack.c.l.b16 %v705
    %v789 = vunpack.c.h.b16 %v705
    %v790 = vunpack.c.l.b16 %v706
    %v791 = vunpack.c.h.b16 %v706
    %v792 = vunpack.c.l.b16 %v707
    %v793 = vunpack.c.h.b16 %v707
    %v794 = vunpack.c.l.b16 %v708
    %v795 = vunpack.c.h.b16 %v708
    %v796 = vunpack.c.l.b16 %v709
    %v797 = vunpack.c.h.b16 %v709
    %v798 = vunpack.c.l.b16 %v710
    %v799 = vunpack.c.h.b16 %v710
    %v800 = vunpack.c.l.b16 %v711
    %v801 = vunpack.c.h.b16 %v711
    %v802 = vunpack.c.l.b16 %v712
    %v803 = vunpack.c.h.b16 %v712
    %v804 = vunpack.c.l.b16 %v713
    %v805 = vunpack.c.h.b16 %v713
    %v806 = vunpack.c.l.b16 %v714
    %v807 = vunpack.c.h.b16 %v714
    %v808 = vunpack.c.l.b16 %v715
    %v809 = vunpack.c.h.b16 %v715
    %v810 = vunpack.c.l.b16 %v716
    %v811 = vunpack.c.h.b16 %v716
    %v812 = vunpack.c.l.b16 %v717
    %v813 = vunpack.c.h.b16 %v717
    %v814 = vpack.c.b16 %v754, %v750
    %v815 = vpack.c.b16 %v755, %v751
    %v816 = vpack.c.b16 %v756, %v752
    %v817 = vpack.c.b16 %v757, %v753
    %v818 = vpack.c.b16 %v762, %v758
    %v819 = vpack.c.b16 %v763, %v759
    %v820 = vpack.c.b16 %v764, %v760
    %v821 = vpack.c.b16 %v765, %v761
    %v822 = vpack.c.b16 %v770, %v766
    %v823 = vpack.c.b16 %v771, %v767
    %v824 = vpack.c.b16 %v772, %v768
    %v825 = vpack.c.b16 %v773, %v769
    %v826 = vpack.c.b16 %v778, %v774
    %v827 = vpack.c.b16 %v779, %v775
    %v828 = vpack.c.b16 %v780, %v776
    %v829 = vpack.c.b16 %v781, %v777
    %v830 = vpack.c.b16 %v786, %v782
    %v831 = vpack.c.b16 %v787, %v783
    %v832 = vpack.c.b16 %v788, %v784
    %v833 = vpack.c.b16 %v789, %v785
    %v834 = vpack.c.b16 %v794, %v790
    %v835 = vpack.c.b16 %v795, %v791
    %v836 = vpack.c.b16 %v796, %v792
    %v837 = vpack.c.b16 %v797, %v793
    %v838 = vpack.c.b16 %v802, %v798
    %v839 = vpack.c.b16 %v803, %v799
    %v840 = vpack.c.b16 %v804, %v800
    %v841 = vpack.c.b16 %v805, %v801
    %v842 = vpack.c.b16 %v810, %v806
    %v843 = vpack.c.b16 %v811, %v807
    %v844 = vpack.c.b16 %v812, %v808
    %v845 = vpack.c.b16 %v813, %v809
    %878 = vmatprep.subr.bf16.mxu0 %v843
    %879 = vmatpush1.bf16.msra.mxu0 %v842
    %880 = vmatprep.subr.bf16.mxu0 %v839
    %881 = vmatpush1.bf16.msra.mxu0 %v838
    %882 = vmatprep.subr.bf16.mxu0 %v835
    %883 = vmatpush1.bf16.msra.mxu0 %v834
    %884 = vmatprep.subr.bf16.mxu0 %v831
    %885 = vmatpush1.bf16.msra.mxu0 %v830
    %886 = vmatprep.subr.bf16.mxu0 %v827
    %887 = vmatpush1.bf16.msra.mxu0 %v826
    %888 = vmatprep.subr.bf16.mxu0 %v823
    %889 = vmatpush1.bf16.msra.mxu0 %v822
    %890 = vmatprep.subr.bf16.mxu0 %v819
    %891 = vmatpush1.bf16.msra.mxu0 %v818
    %892 = vmatprep.subr.bf16.mxu0 %v815
    %893 = vmatpush1.bf16.msra.mxu0 %v814
    %894 = vmatprep.subr.bf16.mxu0 0
    %895 = vmatpush2.bf16.msra.mxu0 0
    %896 = vmatprep.subr.bf16.mxu0 0
    %897 = vmatpush2.bf16.msra.mxu0 0
    %898 = vmatprep.subr.bf16.mxu0 0
    %899 = vmatpush2.bf16.msra.mxu0 0
    %900 = vmatprep.subr.bf16.mxu0 0
    %901 = vmatpush2.bf16.msra.mxu0 0
    %902 = vmatprep.subr.bf16.mxu0 0
    %903 = vmatpush2.bf16.msra.mxu0 0
    %904 = vmatprep.subr.bf16.mxu0 0
    %905 = vmatpush2.bf16.msra.mxu0 0
    %906 = vmatprep.subr.bf16.mxu0 0
    %907 = vmatpush2.bf16.msra.mxu0 0
    %908 = vmatprep.subr.bf16.mxu0 0
    %909 = vmatpush2.bf16.msra.mxu0 0
    %910 = vmatprep.mubr.bf16.mxu0 0
    %911 = vmatmul.mubr.bf16.gmra.mxu0 %v685
    %v912 = vpop.f32.mrf.mxu0
    %v913 = vadd.f32 0.0, %v912
    %v914 = vpop.f32.mrf.mxu0
    %v915 = vadd.f32 0.0, %v914
    %v916 = vpop.f32.mrf.mxu0
    %v917 = vpop.f32.mrf.mxu0
    %918 = vdwg.mxu0
    %919 = vmatprep.subr.bf16.mxu0 %v845
    %920 = vmatpush1.bf16.msra.mxu0 %v844
    %921 = vmatprep.subr.bf16.mxu0 %v841
    %922 = vmatpush1.bf16.msra.mxu0 %v840
    %923 = vmatprep.subr.bf16.mxu0 %v837
    %924 = vmatpush1.bf16.msra.mxu0 %v836
    %925 = vmatprep.subr.bf16.mxu0 %v833
    %926 = vmatpush1.bf16.msra.mxu0 %v832
    %927 = vmatprep.subr.bf16.mxu0 %v829
    %928 = vmatpush1.bf16.msra.mxu0 %v828
    %929 = vmatprep.subr.bf16.mxu0 %v825
    %930 = vmatpush1.bf16.msra.mxu0 %v824
    %931 = vmatprep.subr.bf16.mxu0 %v821
    %932 = vmatpush1.bf16.msra.mxu0 %v820
    %933 = vmatprep.subr.bf16.mxu0 %v817
    %934 = vmatpush1.bf16.msra.mxu0 %v816
    %935 = vmatprep.subr.bf16.mxu0 0
    %936 = vmatpush2.bf16.msra.mxu0 0
    %937 = vmatprep.subr.bf16.mxu0 0
    %938 = vmatpush2.bf16.msra.mxu0 0
    %939 = vmatprep.subr.bf16.mxu0 0
    %940 = vmatpush2.bf16.msra.mxu0 0
    %941 = vmatprep.subr.bf16.mxu0 0
    %942 = vmatpush2.bf16.msra.mxu0 0
    %943 = vmatprep.subr.bf16.mxu0 0
    %944 = vmatpush2.bf16.msra.mxu0 0
    %945 = vmatprep.subr.bf16.mxu0 0
    %946 = vmatpush2.bf16.msra.mxu0 0
    %947 = vmatprep.subr.bf16.mxu0 0
    %948 = vmatpush2.bf16.msra.mxu0 0
    %949 = vmatprep.subr.bf16.mxu0 0
    %950 = vmatpush2.bf16.msra.mxu0 0
    %951 = vmatprep.mubr.bf16.mxu0 0
    %952 = vmatmul.mubr.bf16.gmra.mxu0 %v685
    %v953 = vpop.f32.mrf.mxu0
    %v954 = vadd.f32 0.0, %v953
    %v955 = vpop.f32.mrf.mxu0
    %v956 = vadd.f32 0.0, %v955
    %v957 = vpop.f32.mrf.mxu0
    %v958 = vpop.f32.mrf.mxu0
    %959 = vdwg.mxu0
    %v960 = vadd.f32 %v681, %v913
    %v961 = vadd.f32 %v682, %v915
    %v962 = vadd.f32 %v683, %v954
    %v963 = vadd.f32 %v684, %v956
    %v964 = vxor.u32 %v960, 2147483648
    %v965 = vxor.u32 %v961, 2147483648
    %v966 = vxor.u32 %v962, 2147483648
    %v967 = vmul.f32 %v964, 1.442695
    %v968 = vpow.pop %v967
    %v969 = vmul.f32 %v965, 1.442695
    %v970 = vpow.pop %v969
    %v971 = vmul.f32 %v966, 1.442695
    %v972 = vpow.pop %v971
    %v973 = vadd.f32 %v968, 1.0
    %v974 = vadd.f32 %v970, 1.0
    %v975 = vadd.f32 %v972, 1.0
    %v976 = vrcp.pop %v973
    %v977 = vmul.f32 1.0, %v976
    %v978 = vrcp.pop %v974
    %v979 = vmul.f32 1.0, %v978
    %v980 = vrcp.pop %v975
    %v981 = vmul.f32 1.0, %v980
    %v982 = vtanh.pop %v963
    %v983 = vmul.f32 %v979, %v674
    %v984 = vmul.f32 %v977, %v982
    %v985 = vadd.f32 %v983, %v984
    %v986 = vtanh.pop %v985
    %v987 = vmul.f32 %v981, %v986
    %s988 = scalar_lea.vmem [#allocation3], 8
    %989 = vst [vmem:[%s988] sm:$0xff] %v987
    %s990 = smul.u32 2, 4
    %s991 = smul.addr %s990, 8
    %s992 = scalar_lea.vmem [#allocation2], %s991
    %v993 = vld [vmem:[%s992] sm:$0xff]
    %v994 = vld [vmem:[%s992 + $0x8] sm:$0xff]
    %v995 = vld [vmem:[%s992 + $0x10] sm:$0xff]
    %v996 = vld [vmem:[%s992 + $0x18] sm:$0xff]
    %v997 = vpack.c.bf16 %v987, %v987
    %v998 = vld [vmem:[#allocation5] sm:$0xff]
    %v999 = vld [vmem:[#allocation5 + $0x8] sm:$0xff]
    %v1000 = vld [vmem:[#allocation5 + $0x10] sm:$0xff]
    %v1001 = vld [vmem:[#allocation5 + $0x18] sm:$0xff]
    %v1002 = vld [vmem:[#allocation5 + $0x20] sm:$0xff]
    %v1003 = vld [vmem:[#allocation5 + $0x28] sm:$0xff]
    %v1004 = vld [vmem:[#allocation5 + $0x30] sm:$0xff]
    %v1005 = vld [vmem:[#allocation5 + $0x38] sm:$0xff]
    %v1006 = vld [vmem:[#allocation5 + $0x40] sm:$0xff]
    %v1007 = vld [vmem:[#allocation5 + $0x48] sm:$0xff]
    %v1008 = vld [vmem:[#allocation5 + $0x50] sm:$0xff]
    %v1009 = vld [vmem:[#allocation5 + $0x58] sm:$0xff]
    %v1010 = vld [vmem:[#allocation5 + $0x60] sm:$0xff]
    %v1011 = vld [vmem:[#allocation5 + $0x68] sm:$0xff]
    %v1012 = vld [vmem:[#allocation5 + $0x70] sm:$0xff]
    %v1013 = vld [vmem:[#allocation5 + $0x78] sm:$0xff]
    %v1014 = vld [vmem:[#allocation5 + $0x80] sm:$0xff]
    %v1015 = vld [vmem:[#allocation5 + $0x88] sm:$0xff]
    %v1016 = vld [vmem:[#allocation5 + $0x90] sm:$0xff]
    %v1017 = vld [vmem:[#allocation5 + $0x98] sm:$0xff]
    %v1018 = vld [vmem:[#allocation5 + $0xa0] sm:$0xff]
    %v1019 = vld [vmem:[#allocation5 + $0xa8] sm:$0xff]
    %v1020 = vld [vmem:[#allocation5 + $0xb0] sm:$0xff]
    %v1021 = vld [vmem:[#allocation5 + $0xb8] sm:$0xff]
    %v1022 = vld [vmem:[#allocation5 + $0xc0] sm:$0xff]
    %v1023 = vld [vmem:[#allocation5 + $0xc8] sm:$0xff]
    %v1024 = vld [vmem:[#allocation5 + $0xd0] sm:$0xff]
    %v1025 = vld [vmem:[#allocation5 + $0xd8] sm:$0xff]
    %v1026 = vld [vmem:[#allocation5 + $0xe0] sm:$0xff]
    %v1027 = vld [vmem:[#allocation5 + $0xe8] sm:$0xff]
    %v1028 = vld [vmem:[#allocation5 + $0xf0] sm:$0xff]
    %v1029 = vld [vmem:[#allocation5 + $0xf8] sm:$0xff]
    %v1062 = vunpack.c.l.b16 %v998
    %v1063 = vunpack.c.h.b16 %v998
    %v1064 = vunpack.c.l.b16 %v999
    %v1065 = vunpack.c.h.b16 %v999
    %v1066 = vunpack.c.l.b16 %v1000
    %v1067 = vunpack.c.h.b16 %v1000
    %v1068 = vunpack.c.l.b16 %v1001
    %v1069 = vunpack.c.h.b16 %v1001
    %v1070 = vunpack.c.l.b16 %v1002
    %v1071 = vunpack.c.h.b16 %v1002
    %v1072 = vunpack.c.l.b16 %v1003
    %v1073 = vunpack.c.h.b16 %v1003
    %v1074 = vunpack.c.l.b16 %v1004
    %v1075 = vunpack.c.h.b16 %v1004
    %v1076 = vunpack.c.l.b16 %v1005
    %v1077 = vunpack.c.h.b16 %v1005
    %v1078 = vunpack.c.l.b16 %v1006
    %v1079 = vunpack.c.h.b16 %v1006
    %v1080 = vunpack.c.l.b16 %v1007
    %v1081 = vunpack.c.h.b16 %v1007
    %v1082 = vunpack.c.l.b16 %v1008
    %v1083 = vunpack.c.h.b16 %v1008
    %v1084 = vunpack.c.l.b16 %v1009
    %v1085 = vunpack.c.h.b16 %v1009
    %v1086 = vunpack.c.l.b16 %v1010
    %v1087 = vunpack.c.h.b16 %v1010
    %v1088 = vunpack.c.l.b16 %v1011
    %v1089 = vunpack.c.h.b16 %v1011
    %v1090 = vunpack.c.l.b16 %v1012
    %v1091 = vunpack.c.h.b16 %v1012
    %v1092 = vunpack.c.l.b16 %v1013
    %v1093 = vunpack.c.h.b16 %v1013
    %v1094 = vunpack.c.l.b16 %v1014
    %v1095 = vunpack.c.h.b16 %v1014
    %v1096 = vunpack.c.l.b16 %v1015
    %v1097 = vunpack.c.h.b16 %v1015
    %v1098 = vunpack.c.l.b16 %v1016
    %v1099 = vunpack.c.h.b16 %v1016
    %v1100 = vunpack.c.l.b16 %v1017
    %v1101 = vunpack.c.h.b16 %v1017
    %v1102 = vunpack.c.l.b16 %v1018
    %v1103 = vunpack.c.h.b16 %v1018
    %v1104 = vunpack.c.l.b16 %v1019
    %v1105 = vunpack.c.h.b16 %v1019
    %v1106 = vunpack.c.l.b16 %v1020
    %v1107 = vunpack.c.h.b16 %v1020
    %v1108 = vunpack.c.l.b16 %v1021
    %v1109 = vunpack.c.h.b16 %v1021
    %v1110 = vunpack.c.l.b16 %v1022
    %v1111 = vunpack.c.h.b16 %v1022
    %v1112 = vunpack.c.l.b16 %v1023
    %v1113 = vunpack.c.h.b16 %v1023
    %v1114 = vunpack.c.l.b16 %v1024
    %v1115 = vunpack.c.h.b16 %v1024
    %v1116 = vunpack.c.l.b16 %v1025
    %v1117 = vunpack.c.h.b16 %v1025
    %v1118 = vunpack.c.l.b16 %v1026
    %v1119 = vunpack.c.h.b16 %v1026
    %v1120 = vunpack.c.l.b16 %v1027
    %v1121 = vunpack.c.h.b16 %v1027
    %v1122 = vunpack.c.l.b16 %v1028
    %v1123 = vunpack.c.h.b16 %v1028
    %v1124 = vunpack.c.l.b16 %v1029
    %v1125 = vunpack.c.h.b16 %v1029
    %v1126 = vpack.c.b16 %v1066, %v1062
    %v1127 = vpack.c.b16 %v1067, %v1063
    %v1128 = vpack.c.b16 %v1068, %v1064
    %v1129 = vpack.c.b16 %v1069, %v1065
    %v1130 = vpack.c.b16 %v1074, %v1070
    %v1131 = vpack.c.b16 %v1075, %v1071
    %v1132 = vpack.c.b16 %v1076, %v1072
    %v1133 = vpack.c.b16 %v1077, %v1073
    %v1134 = vpack.c.b16 %v1082, %v1078
    %v1135 = vpack.c.b16 %v1083, %v1079
    %v1136 = vpack.c.b16 %v1084, %v1080
    %v1137 = vpack.c.b16 %v1085, %v1081
    %v1138 = vpack.c.b16 %v1090, %v1086
    %v1139 = vpack.c.b16 %v1091, %v1087
    %v1140 = vpack.c.b16 %v1092, %v1088
    %v1141 = vpack.c.b16 %v1093, %v1089
    %v1142 = vpack.c.b16 %v1098, %v1094
    %v1143 = vpack.c.b16 %v1099, %v1095
    %v1144 = vpack.c.b16 %v1100, %v1096
    %v1145 = vpack.c.b16 %v1101, %v1097
    %v1146 = vpack.c.b16 %v1106, %v1102
    %v1147 = vpack.c.b16 %v1107, %v1103
    %v1148 = vpack.c.b16 %v1108, %v1104
    %v1149 = vpack.c.b16 %v1109, %v1105
    %v1150 = vpack.c.b16 %v1114, %v1110
    %v1151 = vpack.c.b16 %v1115, %v1111
    %v1152 = vpack.c.b16 %v1116, %v1112
    %v1153 = vpack.c.b16 %v1117, %v1113
    %v1154 = vpack.c.b16 %v1122, %v1118
    %v1155 = vpack.c.b16 %v1123, %v1119
    %v1156 = vpack.c.b16 %v1124, %v1120
    %v1157 = vpack.c.b16 %v1125, %v1121
    %1190 = vmatprep.subr.bf16.mxu0 %v1155
    %1191 = vmatpush1.bf16.msra.mxu0 %v1154
    %1192 = vmatprep.subr.bf16.mxu0 %v1151
    %1193 = vmatpush1.bf16.msra.mxu0 %v1150
    %1194 = vmatprep.subr.bf16.mxu0 %v1147
    %1195 = vmatpush1.bf16.msra.mxu0 %v1146
    %1196 = vmatprep.subr.bf16.mxu0 %v1143
    %1197 = vmatpush1.bf16.msra.mxu0 %v1142
    %1198 = vmatprep.subr.bf16.mxu0 %v1139
    %1199 = vmatpush1.bf16.msra.mxu0 %v1138
    %1200 = vmatprep.subr.bf16.mxu0 %v1135
    %1201 = vmatpush1.bf16.msra.mxu0 %v1134
    %1202 = vmatprep.subr.bf16.mxu0 %v1131
    %1203 = vmatpush1.bf16.msra.mxu0 %v1130
    %1204 = vmatprep.subr.bf16.mxu0 %v1127
    %1205 = vmatpush1.bf16.msra.mxu0 %v1126
    %1206 = vmatprep.subr.bf16.mxu0 0
    %1207 = vmatpush2.bf16.msra.mxu0 0
    %1208 = vmatprep.subr.bf16.mxu0 0
    %1209 = vmatpush2.bf16.msra.mxu0 0
    %1210 = vmatprep.subr.bf16.mxu0 0
    %1211 = vmatpush2.bf16.msra.mxu0 0
    %1212 = vmatprep.subr.bf16.mxu0 0
    %1213 = vmatpush2.bf16.msra.mxu0 0
    %1214 = vmatprep.subr.bf16.mxu0 0
    %1215 = vmatpush2.bf16.msra.mxu0 0
    %1216 = vmatprep.subr.bf16.mxu0 0
    %1217 = vmatpush2.bf16.msra.mxu0 0
    %1218 = vmatprep.subr.bf16.mxu0 0
    %1219 = vmatpush2.bf16.msra.mxu0 0
    %1220 = vmatprep.subr.bf16.mxu0 0
    %1221 = vmatpush2.bf16.msra.mxu0 0
    %1222 = vmatprep.mubr.bf16.mxu0 0
    %1223 = vmatmul.mubr.bf16.gmra.mxu0 %v997
    %v1224 = vpop.f32.mrf.mxu0
    %v1225 = vadd.f32 0.0, %v1224
    %v1226 = vpop.f32.mrf.mxu0
    %v1227 = vadd.f32 0.0, %v1226
    %v1228 = vpop.f32.mrf.mxu0
    %v1229 = vpop.f32.mrf.mxu0
    %1230 = vdwg.mxu0
    %1231 = vmatprep.subr.bf16.mxu0 %v1157
    %1232 = vmatpush1.bf16.msra.mxu0 %v1156
    %1233 = vmatprep.subr.bf16.mxu0 %v1153
    %1234 = vmatpush1.bf16.msra.mxu0 %v1152
    %1235 = vmatprep.subr.bf16.mxu0 %v1149
    %1236 = vmatpush1.bf16.msra.mxu0 %v1148
    %1237 = vmatprep.subr.bf16.mxu0 %v1145
    %1238 = vmatpush1.bf16.msra.mxu0 %v1144
    %1239 = vmatprep.subr.bf16.mxu0 %v1141
    %1240 = vmatpush1.bf16.msra.mxu0 %v1140
    %1241 = vmatprep.subr.bf16.mxu0 %v1137
    %1242 = vmatpush1.bf16.msra.mxu0 %v1136
    %1243 = vmatprep.subr.bf16.mxu0 %v1133
    %1244 = vmatpush1.bf16.msra.mxu0 %v1132
    %1245 = vmatprep.subr.bf16.mxu0 %v1129
    %1246 = vmatpush1.bf16.msra.mxu0 %v1128
    %1247 = vmatprep.subr.bf16.mxu0 0
    %1248 = vmatpush2.bf16.msra.mxu0 0
    %1249 = vmatprep.subr.bf16.mxu0 0
    %1250 = vmatpush2.bf16.msra.mxu0 0
    %1251 = vmatprep.subr.bf16.mxu0 0
    %1252 = vmatpush2.bf16.msra.mxu0 0
    %1253 = vmatprep.subr.bf16.mxu0 0
    %1254 = vmatpush2.bf16.msra.mxu0 0
    %1255 = vmatprep.subr.bf16.mxu0 0
    %1256 = vmatpush2.bf16.msra.mxu0 0
    %1257 = vmatprep.subr.bf16.mxu0 0
    %1258 = vmatpush2.bf16.msra.mxu0 0
    %1259 = vmatprep.subr.bf16.mxu0 0
    %1260 = vmatpush2.bf16.msra.mxu0 0
    %1261 = vmatprep.subr.bf16.mxu0 0
    %1262 = vmatpush2.bf16.msra.mxu0 0
    %1263 = vmatprep.mubr.bf16.mxu0 0
    %1264 = vmatmul.mubr.bf16.gmra.mxu0 %v997
    %v1265 = vpop.f32.mrf.mxu0
    %v1266 = vadd.f32 0.0, %v1265
    %v1267 = vpop.f32.mrf.mxu0
    %v1268 = vadd.f32 0.0, %v1267
    %v1269 = vpop.f32.mrf.mxu0
    %v1270 = vpop.f32.mrf.mxu0
    %1271 = vdwg.mxu0
    %v1272 = vadd.f32 %v993, %v1225
    %v1273 = vadd.f32 %v994, %v1227
    %v1274 = vadd.f32 %v995, %v1266
    %v1275 = vadd.f32 %v996, %v1268
    %v1276 = vxor.u32 %v1272, 2147483648
    %v1277 = vxor.u32 %v1273, 2147483648
    %v1278 = vxor.u32 %v1274, 2147483648
    %v1279 = vmul.f32 %v1276, 1.442695
    %v1280 = vpow.pop %v1279
    %v1281 = vmul.f32 %v1277, 1.442695
    %v1282 = vpow.pop %v1281
    %v1283 = vmul.f32 %v1278, 1.442695
    %v1284 = vpow.pop %v1283
    %v1285 = vadd.f32 %v1280, 1.0
    %v1286 = vadd.f32 %v1282, 1.0
    %v1287 = vadd.f32 %v1284, 1.0
    %v1288 = vrcp.pop %v1285
    %v1289 = vmul.f32 1.0, %v1288
    %v1290 = vrcp.pop %v1286
    %v1291 = vmul.f32 1.0, %v1290
    %v1292 = vrcp.pop %v1287
    %v1293 = vmul.f32 1.0, %v1292
    %v1294 = vtanh.pop %v1275
    %v1295 = vmul.f32 %v1291, %v985
    %v1296 = vmul.f32 %v1289, %v1294
    %v1297 = vadd.f32 %v1295, %v1296
    %v1298 = vtanh.pop %v1297
    %v1299 = vmul.f32 %v1293, %v1298
    %s1300 = scalar_lea.vmem [#allocation3], 16
    %1301 = vst [vmem:[%s1300] sm:$0xff] %v1299
    %s1302 = smul.u32 3, 4
    %s1303 = smul.addr %s1302, 8
    %s1304 = scalar_lea.vmem [#allocation2], %s1303
    %v1305 = vld [vmem:[%s1304] sm:$0xff]
    %v1306 = vld [vmem:[%s1304 + $0x8] sm:$0xff]
    %v1307 = vld [vmem:[%s1304 + $0x10] sm:$0xff]
    %v1308 = vld [vmem:[%s1304 + $0x18] sm:$0xff]
    %v1309 = vpack.c.bf16 %v1299, %v1299
    %v1310 = vld [vmem:[#allocation5] sm:$0xff]
    %v1311 = vld [vmem:[#allocation5 + $0x8] sm:$0xff]
    %v1312 = vld [vmem:[#allocation5 + $0x10] sm:$0xff]
    %v1313 = vld [vmem:[#allocation5 + $0x18] sm:$0xff]
    %v1314 = vld [vmem:[#allocation5 + $0x20] sm:$0xff]
    %v1315 = vld [vmem:[#allocation5 + $0x28] sm:$0xff]
    %v1316 = vld [vmem:[#allocation5 + $0x30] sm:$0xff]
    %v1317 = vld [vmem:[#allocation5 + $0x38] sm:$0xff]
    %v1318 = vld [vmem:[#allocation5 + $0x40] sm:$0xff]
    %v1319 = vld [vmem:[#allocation5 + $0x48] sm:$0xff]
    %v1320 = vld [vmem:[#allocation5 + $0x50] sm:$0xff]
    %v1321 = vld [vmem:[#allocation5 + $0x58] sm:$0xff]
    %v1322 = vld [vmem:[#allocation5 + $0x60] sm:$0xff]
    %v1323 = vld [vmem:[#allocation5 + $0x68] sm:$0xff]
    %v1324 = vld [vmem:[#allocation5 + $0x70] sm:$0xff]
    %v1325 = vld [vmem:[#allocation5 + $0x78] sm:$0xff]
    %v1326 = vld [vmem:[#allocation5 + $0x80] sm:$0xff]
    %v1327 = vld [vmem:[#allocation5 + $0x88] sm:$0xff]
    %v1328 = vld [vmem:[#allocation5 + $0x90] sm:$0xff]
    %v1329 = vld [vmem:[#allocation5 + $0x98] sm:$0xff]
    %v1330 = vld [vmem:[#allocation5 + $0xa0] sm:$0xff]
    %v1331 = vld [vmem:[#allocation5 + $0xa8] sm:$0xff]
    %v1332 = vld [vmem:[#allocation5 + $0xb0] sm:$0xff]
    %v1333 = vld [vmem:[#allocation5 + $0xb8] sm:$0xff]
    %v1334 = vld [vmem:[#allocation5 + $0xc0] sm:$0xff]
    %v1335 = vld [vmem:[#allocation5 + $0xc8] sm:$0xff]
    %v1336 = vld [vmem:[#allocation5 + $0xd0] sm:$0xff]
    %v1337 = vld [vmem:[#allocation5 + $0xd8] sm:$0xff]
    %v1338 = vld [vmem:[#allocation5 + $0xe0] sm:$0xff]
    %v1339 = vld [vmem:[#allocation5 + $0xe8] sm:$0xff]
    %v1340 = vld [vmem:[#allocation5 + $0xf0] sm:$0xff]
    %v1341 = vld [vmem:[#allocation5 + $0xf8] sm:$0xff]
    %v1374 = vunpack.c.l.b16 %v1310
    %v1375 = vunpack.c.h.b16 %v1310
    %v1376 = vunpack.c.l.b16 %v1311
    %v1377 = vunpack.c.h.b16 %v1311
    %v1378 = vunpack.c.l.b16 %v1312
    %v1379 = vunpack.c.h.b16 %v1312
    %v1380 = vunpack.c.l.b16 %v1313
    %v1381 = vunpack.c.h.b16 %v1313
    %v1382 = vunpack.c.l.b16 %v1314
    %v1383 = vunpack.c.h.b16 %v1314
    %v1384 = vunpack.c.l.b16 %v1315
    %v1385 = vunpack.c.h.b16 %v1315
    %v1386 = vunpack.c.l.b16 %v1316
    %v1387 = vunpack.c.h.b16 %v1316
    %v1388 = vunpack.c.l.b16 %v1317
    %v1389 = vunpack.c.h.b16 %v1317
    %v1390 = vunpack.c.l.b16 %v1318
    %v1391 = vunpack.c.h.b16 %v1318
    %v1392 = vunpack.c.l.b16 %v1319
    %v1393 = vunpack.c.h.b16 %v1319
    %v1394 = vunpack.c.l.b16 %v1320
    %v1395 = vunpack.c.h.b16 %v1320
    %v1396 = vunpack.c.l.b16 %v1321
    %v1397 = vunpack.c.h.b16 %v1321
    %v1398 = vunpack.c.l.b16 %v1322
    %v1399 = vunpack.c.h.b16 %v1322
    %v1400 = vunpack.c.l.b16 %v1323
    %v1401 = vunpack.c.h.b16 %v1323
    %v1402 = vunpack.c.l.b16 %v1324
    %v1403 = vunpack.c.h.b16 %v1324
    %v1404 = vunpack.c.l.b16 %v1325
    %v1405 = vunpack.c.h.b16 %v1325
    %v1406 = vunpack.c.l.b16 %v1326
    %v1407 = vunpack.c.h.b16 %v1326
    %v1408 = vunpack.c.l.b16 %v1327
    %v1409 = vunpack.c.h.b16 %v1327
    %v1410 = vunpack.c.l.b16 %v1328
    %v1411 = vunpack.c.h.b16 %v1328
    %v1412 = vunpack.c.l.b16 %v1329
    %v1413 = vunpack.c.h.b16 %v1329
    %v1414 = vunpack.c.l.b16 %v1330
    %v1415 = vunpack.c.h.b16 %v1330
    %v1416 = vunpack.c.l.b16 %v1331
    %v1417 = vunpack.c.h.b16 %v1331
    %v1418 = vunpack.c.l.b16 %v1332
    %v1419 = vunpack.c.h.b16 %v1332
    %v1420 = vunpack.c.l.b16 %v1333
    %v1421 = vunpack.c.h.b16 %v1333
    %v1422 = vunpack.c.l.b16 %v1334
    %v1423 = vunpack.c.h.b16 %v1334
    %v1424 = vunpack.c.l.b16 %v1335
    %v1425 = vunpack.c.h.b16 %v1335
    %v1426 = vunpack.c.l.b16 %v1336
    %v1427 = vunpack.c.h.b16 %v1336
    %v1428 = vunpack.c.l.b16 %v1337
    %v1429 = vunpack.c.h.b16 %v1337
    %v1430 = vunpack.c.l.b16 %v1338
    %v1431 = vunpack.c.h.b16 %v1338
    %v1432 = vunpack.c.l.b16 %v1339
    %v1433 = vunpack.c.h.b16 %v1339
    %v1434 = vunpack.c.l.b16 %v1340
    %v1435 = vunpack.c.h.b16 %v1340
    %v1436 = vunpack.c.l.b16 %v1341
    %v1437 = vunpack.c.h.b16 %v1341
    %v1438 = vpack.c.b16 %v1378, %v1374
    %v1439 = vpack.c.b16 %v1379, %v1375
    %v1440 = vpack.c.b16 %v1380, %v1376
    %v1441 = vpack.c.b16 %v1381, %v1377
    %v1442 = vpack.c.b16 %v1386, %v1382
    %v1443 = vpack.c.b16 %v1387, %v1383
    %v1444 = vpack.c.b16 %v1388, %v1384
    %v1445 = vpack.c.b16 %v1389, %v1385
    %v1446 = vpack.c.b16 %v1394, %v1390
    %v1447 = vpack.c.b16 %v1395, %v1391
    %v1448 = vpack.c.b16 %v1396, %v1392
    %v1449 = vpack.c.b16 %v1397, %v1393
    %v1450 = vpack.c.b16 %v1402, %v1398
    %v1451 = vpack.c.b16 %v1403, %v1399
    %v1452 = vpack.c.b16 %v1404, %v1400
    %v1453 = vpack.c.b16 %v1405, %v1401
    %v1454 = vpack.c.b16 %v1410, %v1406
    %v1455 = vpack.c.b16 %v1411, %v1407
    %v1456 = vpack.c.b16 %v1412, %v1408
    %v1457 = vpack.c.b16 %v1413, %v1409
    %v1458 = vpack.c.b16 %v1418, %v1414
    %v1459 = vpack.c.b16 %v1419, %v1415
    %v1460 = vpack.c.b16 %v1420, %v1416
    %v1461 = vpack.c.b16 %v1421, %v1417
    %v1462 = vpack.c.b16 %v1426, %v1422
    %v1463 = vpack.c.b16 %v1427, %v1423
    %v1464 = vpack.c.b16 %v1428, %v1424
    %v1465 = vpack.c.b16 %v1429, %v1425
    %v1466 = vpack.c.b16 %v1434, %v1430
    %v1467 = vpack.c.b16 %v1435, %v1431
    %v1468 = vpack.c.b16 %v1436, %v1432
    %v1469 = vpack.c.b16 %v1437, %v1433
    %1502 = vmatprep.subr.bf16.mxu0 %v1467
    %1503 = vmatpush1.bf16.msra.mxu0 %v1466
    %1504 = vmatprep.subr.bf16.mxu0 %v1463
    %1505 = vmatpush1.bf16.msra.mxu0 %v1462
    %1506 = vmatprep.subr.bf16.mxu0 %v1459
    %1507 = vmatpush1.bf16.msra.mxu0 %v1458
    %1508 = vmatprep.subr.bf16.mxu0 %v1455
    %1509 = vmatpush1.bf16.msra.mxu0 %v1454
    %1510 = vmatprep.subr.bf16.mxu0 %v1451
    %1511 = vmatpush1.bf16.msra.mxu0 %v1450
    %1512 = vmatprep.subr.bf16.mxu0 %v1447
    %1513 = vmatpush1.bf16.msra.mxu0 %v1446
    %1514 = vmatprep.subr.bf16.mxu0 %v1443
    %1515 = vmatpush1.bf16.msra.mxu0 %v1442
    %1516 = vmatprep.subr.bf16.mxu0 %v1439
    %1517 = vmatpush1.bf16.msra.mxu0 %v1438
    %1518 = vmatprep.subr.bf16.mxu0 0
    %1519 = vmatpush2.bf16.msra.mxu0 0
    %1520 = vmatprep.subr.bf16.mxu0 0
    %1521 = vmatpush2.bf16.msra.mxu0 0
    %1522 = vmatprep.subr.bf16.mxu0 0
    %1523 = vmatpush2.bf16.msra.mxu0 0
    %1524 = vmatprep.subr.bf16.mxu0 0
    %1525 = vmatpush2.bf16.msra.mxu0 0
    %1526 = vmatprep.subr.bf16.mxu0 0
    %1527 = vmatpush2.bf16.msra.mxu0 0
    %1528 = vmatprep.subr.bf16.mxu0 0
    %1529 = vmatpush2.bf16.msra.mxu0 0
    %1530 = vmatprep.subr.bf16.mxu0 0
    %1531 = vmatpush2.bf16.msra.mxu0 0
    %1532 = vmatprep.subr.bf16.mxu0 0
    %1533 = vmatpush2.bf16.msra.mxu0 0
    %1534 = vmatprep.mubr.bf16.mxu0 0
    %1535 = vmatmul.mubr.bf16.gmra.mxu0 %v1309
    %v1536 = vpop.f32.mrf.mxu0
    %v1537 = vadd.f32 0.0, %v1536
    %v1538 = vpop.f32.mrf.mxu0
    %v1539 = vadd.f32 0.0, %v1538
    %v1540 = vpop.f32.mrf.mxu0
    %v1541 = vpop.f32.mrf.mxu0
    %1542 = vdwg.mxu0
    %1543 = vmatprep.subr.bf16.mxu0 %v1469
    %1544 = vmatpush1.bf16.msra.mxu0 %v1468
    %1545 = vmatprep.subr.bf16.mxu0 %v1465
    %1546 = vmatpush1.bf16.msra.mxu0 %v1464
    %1547 = vmatprep.subr.bf16.mxu0 %v1461
    %1548 = vmatpush1.bf16.msra.mxu0 %v1460
    %1549 = vmatprep.subr.bf16.mxu0 %v1457
    %1550 = vmatpush1.bf16.msra.mxu0 %v1456
    %1551 = vmatprep.subr.bf16.mxu0 %v1453
    %1552 = vmatpush1.bf16.msra.mxu0 %v1452
    %1553 = vmatprep.subr.bf16.mxu0 %v1449
    %1554 = vmatpush1.bf16.msra.mxu0 %v1448
    %1555 = vmatprep.subr.bf16.mxu0 %v1445
    %1556 = vmatpush1.bf16.msra.mxu0 %v1444
    %1557 = vmatprep.subr.bf16.mxu0 %v1441
    %1558 = vmatpush1.bf16.msra.mxu0 %v1440
    %1559 = vmatprep.subr.bf16.mxu0 0
    %1560 = vmatpush2.bf16.msra.mxu0 0
    %1561 = vmatprep.subr.bf16.mxu0 0
    %1562 = vmatpush2.bf16.msra.mxu0 0
    %1563 = vmatprep.subr.bf16.mxu0 0
    %1564 = vmatpush2.bf16.msra.mxu0 0
    %1565 = vmatprep.subr.bf16.mxu0 0
    %1566 = vmatpush2.bf16.msra.mxu0 0
    %1567 = vmatprep.subr.bf16.mxu0 0
    %1568 = vmatpush2.bf16.msra.mxu0 0
    %1569 = vmatprep.subr.bf16.mxu0 0
    %1570 = vmatpush2.bf16.msra.mxu0 0
    %1571 = vmatprep.subr.bf16.mxu0 0
    %1572 = vmatpush2.bf16.msra.mxu0 0
    %1573 = vmatprep.subr.bf16.mxu0 0
    %1574 = vmatpush2.bf16.msra.mxu0 0
    %1575 = vmatprep.mubr.bf16.mxu0 0
    %1576 = vmatmul.mubr.bf16.gmra.mxu0 %v1309
    %v1577 = vpop.f32.mrf.mxu0
    %v1578 = vadd.f32 0.0, %v1577
    %v1579 = vpop.f32.mrf.mxu0
    %v1580 = vadd.f32 0.0, %v1579
    %v1581 = vpop.f32.mrf.mxu0
    %v1582 = vpop.f32.mrf.mxu0
    %1583 = vdwg.mxu0
    %v1584 = vadd.f32 %v1305, %v1537
    %v1585 = vadd.f32 %v1306, %v1539
    %v1586 = vadd.f32 %v1307, %v1578
    %v1587 = vadd.f32 %v1308, %v1580
    %v1588 = vxor.u32 %v1584, 2147483648
    %v1589 = vxor.u32 %v1585, 2147483648
    %v1590 = vxor.u32 %v1586, 2147483648
    %v1591 = vmul.f32 %v1588, 1.442695
    %v1592 = vpow.pop %v1591
    %v1593 = vmul.f32 %v1589, 1.442695
    %v1594 = vpow.pop %v1593
    %v1595 = vmul.f32 %v1590, 1.442695
    %v1596 = vpow.pop %v1595
    %v1597 = vadd.f32 %v1592, 1.0
    %v1598 = vadd.f32 %v1594, 1.0
    %v1599 = vadd.f32 %v1596, 1.0
    %v1600 = vrcp.pop %v1597
    %v1601 = vmul.f32 1.0, %v1600
    %v1602 = vrcp.pop %v1598
    %v1603 = vmul.f32 1.0, %v1602
    %v1604 = vrcp.pop %v1599
    %v1605 = vmul.f32 1.0, %v1604
    %v1606 = vtanh.pop %v1587
    %v1607 = vmul.f32 %v1603, %v1297
    %v1608 = vmul.f32 %v1601, %v1606
    %v1609 = vadd.f32 %v1607, %v1608
    %v1610 = vtanh.pop %v1609
    %v1611 = vmul.f32 %v1605, %v1610
    %s1612 = scalar_lea.vmem [#allocation3], 24
    %1613 = vst [vmem:[%s1612] sm:$0xff] %v1611
    %s1614 = smul.u32 4, 4
    %s1615 = smul.addr %s1614, 8
    %s1616 = scalar_lea.vmem [#allocation2], %s1615
    %v1617 = vld [vmem:[%s1616] sm:$0xff]
    %v1618 = vld [vmem:[%s1616 + $0x8] sm:$0xff]
    %v1619 = vld [vmem:[%s1616 + $0x10] sm:$0xff]
    %v1620 = vld [vmem:[%s1616 + $0x18] sm:$0xff]
    %v1621 = vpack.c.bf16 %v1611, %v1611
    %v1622 = vld [vmem:[#allocation5] sm:$0xff]
    %v1623 = vld [vmem:[#allocation5 + $0x8] sm:$0xff]
    %v1624 = vld [vmem:[#allocation5 + $0x10] sm:$0xff]
    %v1625 = vld [vmem:[#allocation5 + $0x18] sm:$0xff]
    %v1626 = vld [vmem:[#allocation5 + $0x20] sm:$0xff]
    %v1627 = vld [vmem:[#allocation5 + $0x28] sm:$0xff]
    %v1628 = vld [vmem:[#allocation5 + $0x30] sm:$0xff]
    %v1629 = vld [vmem:[#allocation5 + $0x38] sm:$0xff]
    %v1630 = vld [vmem:[#allocation5 + $0x40] sm:$0xff]
    %v1631 = vld [vmem:[#allocation5 + $0x48] sm:$0xff]
    %v1632 = vld [vmem:[#allocation5 + $0x50] sm:$0xff]
    %v1633 = vld [vmem:[#allocation5 + $0x58] sm:$0xff]
    %v1634 = vld [vmem:[#allocation5 + $0x60] sm:$0xff]
    %v1635 = vld [vmem:[#allocation5 + $0x68] sm:$0xff]
    %v1636 = vld [vmem:[#allocation5 + $0x70] sm:$0xff]
    %v1637 = vld [vmem:[#allocation5 + $0x78] sm:$0xff]
    %v1638 = vld [vmem:[#allocation5 + $0x80] sm:$0xff]
    %v1639 = vld [vmem:[#allocation5 + $0x88] sm:$0xff]
    %v1640 = vld [vmem:[#allocation5 + $0x90] sm:$0xff]
    %v1641 = vld [vmem:[#allocation5 + $0x98] sm:$0xff]
    %v1642 = vld [vmem:[#allocation5 + $0xa0] sm:$0xff]
    %v1643 = vld [vmem:[#allocation5 + $0xa8] sm:$0xff]
    %v1644 = vld [vmem:[#allocation5 + $0xb0] sm:$0xff]
    %v1645 = vld [vmem:[#allocation5 + $0xb8] sm:$0xff]
    %v1646 = vld [vmem:[#allocation5 + $0xc0] sm:$0xff]
    %v1647 = vld [vmem:[#allocation5 + $0xc8] sm:$0xff]
    %v1648 = vld [vmem:[#allocation5 + $0xd0] sm:$0xff]
    %v1649 = vld [vmem:[#allocation5 + $0xd8] sm:$0xff]
    %v1650 = vld [vmem:[#allocation5 + $0xe0] sm:$0xff]
    %v1651 = vld [vmem:[#allocation5 + $0xe8] sm:$0xff]
    %v1652 = vld [vmem:[#allocation5 + $0xf0] sm:$0xff]
    %v1653 = vld [vmem:[#allocation5 + $0xf8] sm:$0xff]
    %v1686 = vunpack.c.l.b16 %v1622
    %v1687 = vunpack.c.h.b16 %v1622
    %v1688 = vunpack.c.l.b16 %v1623
    %v1689 = vunpack.c.h.b16 %v1623
    %v1690 = vunpack.c.l.b16 %v1624
    %v1691 = vunpack.c.h.b16 %v1624
    %v1692 = vunpack.c.l.b16 %v1625
    %v1693 = vunpack.c.h.b16 %v1625
    %v1694 = vunpack.c.l.b16 %v1626
    %v1695 = vunpack.c.h.b16 %v1626
    %v1696 = vunpack.c.l.b16 %v1627
    %v1697 = vunpack.c.h.b16 %v1627
    %v1698 = vunpack.c.l.b16 %v1628
    %v1699 = vunpack.c.h.b16 %v1628
    %v1700 = vunpack.c.l.b16 %v1629
    %v1701 = vunpack.c.h.b16 %v1629
    %v1702 = vunpack.c.l.b16 %v1630
    %v1703 = vunpack.c.h.b16 %v1630
    %v1704 = vunpack.c.l.b16 %v1631
    %v1705 = vunpack.c.h.b16 %v1631
    %v1706 = vunpack.c.l.b16 %v1632
    %v1707 = vunpack.c.h.b16 %v1632
    %v1708 = vunpack.c.l.b16 %v1633
    %v1709 = vunpack.c.h.b16 %v1633
    %v1710 = vunpack.c.l.b16 %v1634
    %v1711 = vunpack.c.h.b16 %v1634
    %v1712 = vunpack.c.l.b16 %v1635
    %v1713 = vunpack.c.h.b16 %v1635
    %v1714 = vunpack.c.l.b16 %v1636
    %v1715 = vunpack.c.h.b16 %v1636
    %v1716 = vunpack.c.l.b16 %v1637
    %v1717 = vunpack.c.h.b16 %v1637
    %v1718 = vunpack.c.l.b16 %v1638
    %v1719 = vunpack.c.h.b16 %v1638
    %v1720 = vunpack.c.l.b16 %v1639
    %v1721 = vunpack.c.h.b16 %v1639
    %v1722 = vunpack.c.l.b16 %v1640
    %v1723 = vunpack.c.h.b16 %v1640
    %v1724 = vunpack.c.l.b16 %v1641
    %v1725 = vunpack.c.h.b16 %v1641
    %v1726 = vunpack.c.l.b16 %v1642
    %v1727 = vunpack.c.h.b16 %v1642
    %v1728 = vunpack.c.l.b16 %v1643
    %v1729 = vunpack.c.h.b16 %v1643
    %v1730 = vunpack.c.l.b16 %v1644
    %v1731 = vunpack.c.h.b16 %v1644
    %v1732 = vunpack.c.l.b16 %v1645
    %v1733 = vunpack.c.h.b16 %v1645
    %v1734 = vunpack.c.l.b16 %v1646
    %v1735 = vunpack.c.h.b16 %v1646
    %v1736 = vunpack.c.l.b16 %v1647
    %v1737 = vunpack.c.h.b16 %v1647
    %v1738 = vunpack.c.l.b16 %v1648
    %v1739 = vunpack.c.h.b16 %v1648
    %v1740 = vunpack.c.l.b16 %v1649
    %v1741 = vunpack.c.h.b16 %v1649
    %v1742 = vunpack.c.l.b16 %v1650
    %v1743 = vunpack.c.h.b16 %v1650
    %v1744 = vunpack.c.l.b16 %v1651
    %v1745 = vunpack.c.h.b16 %v1651
    %v1746 = vunpack.c.l.b16 %v1652
    %v1747 = vunpack.c.h.b16 %v1652
    %v1748 = vunpack.c.l.b16 %v1653
    %v1749 = vunpack.c.h.b16 %v1653
    %v1750 = vpack.c.b16 %v1690, %v1686
    %v1751 = vpack.c.b16 %v1691, %v1687
    %v1752 = vpack.c.b16 %v1692, %v1688
    %v1753 = vpack.c.b16 %v1693, %v1689
    %v1754 = vpack.c.b16 %v1698, %v1694
    %v1755 = vpack.c.b16 %v1699, %v1695
    %v1756 = vpack.c.b16 %v1700, %v1696
    %v1757 = vpack.c.b16 %v1701, %v1697
    %v1758 = vpack.c.b16 %v1706, %v1702
    %v1759 = vpack.c.b16 %v1707, %v1703
    %v1760 = vpack.c.b16 %v1708, %v1704
    %v1761 = vpack.c.b16 %v1709, %v1705
    %v1762 = vpack.c.b16 %v1714, %v1710
    %v1763 = vpack.c.b16 %v1715, %v1711
    %v1764 = vpack.c.b16 %v1716, %v1712
    %v1765 = vpack.c.b16 %v1717, %v1713
    %v1766 = vpack.c.b16 %v1722, %v1718
    %v1767 = vpack.c.b16 %v1723, %v1719
    %v1768 = vpack.c.b16 %v1724, %v1720
    %v1769 = vpack.c.b16 %v1725, %v1721
    %v1770 = vpack.c.b16 %v1730, %v1726
    %v1771 = vpack.c.b16 %v1731, %v1727
    %v1772 = vpack.c.b16 %v1732, %v1728
    %v1773 = vpack.c.b16 %v1733, %v1729
    %v1774 = vpack.c.b16 %v1738, %v1734
    %v1775 = vpack.c.b16 %v1739, %v1735
    %v1776 = vpack.c.b16 %v1740, %v1736
    %v1777 = vpack.c.b16 %v1741, %v1737
    %v1778 = vpack.c.b16 %v1746, %v1742
    %v1779 = vpack.c.b16 %v1747, %v1743
    %v1780 = vpack.c.b16 %v1748, %v1744
    %v1781 = vpack.c.b16 %v1749, %v1745
    %1814 = vmatprep.subr.bf16.mxu0 %v1779
    %1815 = vmatpush1.bf16.msra.mxu0 %v1778
    %1816 = vmatprep.subr.bf16.mxu0 %v1775
    %1817 = vmatpush1.bf16.msra.mxu0 %v1774
    %1818 = vmatprep.subr.bf16.mxu0 %v1771
    %1819 = vmatpush1.bf16.msra.mxu0 %v1770
    %1820 = vmatprep.subr.bf16.mxu0 %v1767
    %1821 = vmatpush1.bf16.msra.mxu0 %v1766
    %1822 = vmatprep.subr.bf16.mxu0 %v1763
    %1823 = vmatpush1.bf16.msra.mxu0 %v1762
    %1824 = vmatprep.subr.bf16.mxu0 %v1759
    %1825 = vmatpush1.bf16.msra.mxu0 %v1758
    %1826 = vmatprep.subr.bf16.mxu0 %v1755
    %1827 = vmatpush1.bf16.msra.mxu0 %v1754
    %1828 = vmatprep.subr.bf16.mxu0 %v1751
    %1829 = vmatpush1.bf16.msra.mxu0 %v1750
    %1830 = vmatprep.subr.bf16.mxu0 0
    %1831 = vmatpush2.bf16.msra.mxu0 0
    %1832 = vmatprep.subr.bf16.mxu0 0
    %1833 = vmatpush2.bf16.msra.mxu0 0
    %1834 = vmatprep.subr.bf16.mxu0 0
    %1835 = vmatpush2.bf16.msra.mxu0 0
    %1836 = vmatprep.subr.bf16.mxu0 0
    %1837 = vmatpush2.bf16.msra.mxu0 0
    %1838 = vmatprep.subr.bf16.mxu0 0
    %1839 = vmatpush2.bf16.msra.mxu0 0
    %1840 = vmatprep.subr.bf16.mxu0 0
    %1841 = vmatpush2.bf16.msra.mxu0 0
    %1842 = vmatprep.subr.bf16.mxu0 0
    %1843 = vmatpush2.bf16.msra.mxu0 0
    %1844 = vmatprep.subr.bf16.mxu0 0
    %1845 = vmatpush2.bf16.msra.mxu0 0
    %1846 = vmatprep.mubr.bf16.mxu0 0
    %1847 = vmatmul.mubr.bf16.gmra.mxu0 %v1621
    %v1848 = vpop.f32.mrf.mxu0
    %v1849 = vadd.f32 0.0, %v1848
    %v1850 = vpop.f32.mrf.mxu0
    %v1851 = vadd.f32 0.0, %v1850
    %v1852 = vpop.f32.mrf.mxu0
    %v1853 = vpop.f32.mrf.mxu0
    %1854 = vdwg.mxu0
    %1855 = vmatprep.subr.bf16.mxu0 %v1781
    %1856 = vmatpush1.bf16.msra.mxu0 %v1780
    %1857 = vmatprep.subr.bf16.mxu0 %v1777
    %1858 = vmatpush1.bf16.msra.mxu0 %v1776
    %1859 = vmatprep.subr.bf16.mxu0 %v1773
    %1860 = vmatpush1.bf16.msra.mxu0 %v1772
    %1861 = vmatprep.subr.bf16.mxu0 %v1769
    %1862 = vmatpush1.bf16.msra.mxu0 %v1768
    %1863 = vmatprep.subr.bf16.mxu0 %v1765
    %1864 = vmatpush1.bf16.msra.mxu0 %v1764
    %1865 = vmatprep.subr.bf16.mxu0 %v1761
    %1866 = vmatpush1.bf16.msra.mxu0 %v1760
    %1867 = vmatprep.subr.bf16.mxu0 %v1757
    %1868 = vmatpush1.bf16.msra.mxu0 %v1756
    %1869 = vmatprep.subr.bf16.mxu0 %v1753
    %1870 = vmatpush1.bf16.msra.mxu0 %v1752
    %1871 = vmatprep.subr.bf16.mxu0 0
    %1872 = vmatpush2.bf16.msra.mxu0 0
    %1873 = vmatprep.subr.bf16.mxu0 0
    %1874 = vmatpush2.bf16.msra.mxu0 0
    %1875 = vmatprep.subr.bf16.mxu0 0
    %1876 = vmatpush2.bf16.msra.mxu0 0
    %1877 = vmatprep.subr.bf16.mxu0 0
    %1878 = vmatpush2.bf16.msra.mxu0 0
    %1879 = vmatprep.subr.bf16.mxu0 0
    %1880 = vmatpush2.bf16.msra.mxu0 0
    %1881 = vmatprep.subr.bf16.mxu0 0
    %1882 = vmatpush2.bf16.msra.mxu0 0
    %1883 = vmatprep.subr.bf16.mxu0 0
    %1884 = vmatpush2.bf16.msra.mxu0 0
    %1885 = vmatprep.subr.bf16.mxu0 0
    %1886 = vmatpush2.bf16.msra.mxu0 0
    %1887 = vmatprep.mubr.bf16.mxu0 0
    %1888 = vmatmul.mubr.bf16.gmra.mxu0 %v1621
    %v1889 = vpop.f32.mrf.mxu0
    %v1890 = vadd.f32 0.0, %v1889
    %v1891 = vpop.f32.mrf.mxu0
    %v1892 = vadd.f32 0.0, %v1891
    %v1893 = vpop.f32.mrf.mxu0
    %v1894 = vpop.f32.mrf.mxu0
    %1895 = vdwg.mxu0
    %v1896 = vadd.f32 %v1617, %v1849
    %v1897 = vadd.f32 %v1618, %v1851
    %v1898 = vadd.f32 %v1619, %v1890
    %v1899 = vadd.f32 %v1620, %v1892
    %v1900 = vxor.u32 %v1896, 2147483648
    %v1901 = vxor.u32 %v1897, 2147483648
    %v1902 = vxor.u32 %v1898, 2147483648
    %v1903 = vmul.f32 %v1900, 1.442695
    %v1904 = vpow.pop %v1903
    %v1905 = vmul.f32 %v1901, 1.442695
    %v1906 = vpow.pop %v1905
    %v1907 = vmul.f32 %v1902, 1.442695
    %v1908 = vpow.pop %v1907
    %v1909 = vadd.f32 %v1904, 1.0
    %v1910 = vadd.f32 %v1906, 1.0
    %v1911 = vadd.f32 %v1908, 1.0
    %v1912 = vrcp.pop %v1909
    %v1913 = vmul.f32 1.0, %v1912
    %v1914 = vrcp.pop %v1910
    %v1915 = vmul.f32 1.0, %v1914
    %v1916 = vrcp.pop %v1911
    %v1917 = vmul.f32 1.0, %v1916
    %v1918 = vtanh.pop %v1899
    %v1919 = vmul.f32 %v1915, %v1609
    %v1920 = vmul.f32 %v1913, %v1918
    %v1921 = vadd.f32 %v1919, %v1920
    %v1922 = vtanh.pop %v1921
    %v1923 = vmul.f32 %v1917, %v1922
    %s1924 = scalar_lea.vmem [#allocation3], 32
    %1925 = vst [vmem:[%s1924] sm:$0xff] %v1923
    %s1926 = smul.u32 5, 4
    %s1927 = smul.addr %s1926, 8
    %s1928 = scalar_lea.vmem [#allocation2], %s1927
    %v1929 = vld [vmem:[%s1928] sm:$0xff]
    %v1930 = vld [vmem:[%s1928 + $0x8] sm:$0xff]
    %v1931 = vld [vmem:[%s1928 + $0x10] sm:$0xff]
    %v1932 = vld [vmem:[%s1928 + $0x18] sm:$0xff]
    %v1933 = vpack.c.bf16 %v1923, %v1923
    %v1934 = vld [vmem:[#allocation5] sm:$0xff]
    %v1935 = vld [vmem:[#allocation5 + $0x8] sm:$0xff]
    %v1936 = vld [vmem:[#allocation5 + $0x10] sm:$0xff]
    %v1937 = vld [vmem:[#allocation5 + $0x18] sm:$0xff]
    %v1938 = vld [vmem:[#allocation5 + $0x20] sm:$0xff]
    %v1939 = vld [vmem:[#allocation5 + $0x28] sm:$0xff]
    %v1940 = vld [vmem:[#allocation5 + $0x30] sm:$0xff]
    %v1941 = vld [vmem:[#allocation5 + $0x38] sm:$0xff]
    %v1942 = vld [vmem:[#allocation5 + $0x40] sm:$0xff]
    %v1943 = vld [vmem:[#allocation5 + $0x48] sm:$0xff]
    %v1944 = vld [vmem:[#allocation5 + $0x50] sm:$0xff]
    %v1945 = vld [vmem:[#allocation5 + $0x58] sm:$0xff]
    %v1946 = vld [vmem:[#allocation5 + $0x60] sm:$0xff]
    %v1947 = vld [vmem:[#allocation5 + $0x68] sm:$0xff]
    %v1948 = vld [vmem:[#allocation5 + $0x70] sm:$0xff]
    %v1949 = vld [vmem:[#allocation5 + $0x78] sm:$0xff]
    %v1950 = vld [vmem:[#allocation5 + $0x80] sm:$0xff]
    %v1951 = vld [vmem:[#allocation5 + $0x88] sm:$0xff]
    %v1952 = vld [vmem:[#allocation5 + $0x90] sm:$0xff]
    %v1953 = vld [vmem:[#allocation5 + $0x98] sm:$0xff]
    %v1954 = vld [vmem:[#allocation5 + $0xa0] sm:$0xff]
    %v1955 = vld [vmem:[#allocation5 + $0xa8] sm:$0xff]
    %v1956 = vld [vmem:[#allocation5 + $0xb0] sm:$0xff]
    %v1957 = vld [vmem:[#allocation5 + $0xb8] sm:$0xff]
    %v1958 = vld [vmem:[#allocation5 + $0xc0] sm:$0xff]
    %v1959 = vld [vmem:[#allocation5 + $0xc8] sm:$0xff]
    %v1960 = vld [vmem:[#allocation5 + $0xd0] sm:$0xff]
    %v1961 = vld [vmem:[#allocation5 + $0xd8] sm:$0xff]
    %v1962 = vld [vmem:[#allocation5 + $0xe0] sm:$0xff]
    %v1963 = vld [vmem:[#allocation5 + $0xe8] sm:$0xff]
    %v1964 = vld [vmem:[#allocation5 + $0xf0] sm:$0xff]
    %v1965 = vld [vmem:[#allocation5 + $0xf8] sm:$0xff]
    %v1998 = vunpack.c.l.b16 %v1934
    %v1999 = vunpack.c.h.b16 %v1934
    %v2000 = vunpack.c.l.b16 %v1935
    %v2001 = vunpack.c.h.b16 %v1935
    %v2002 = vunpack.c.l.b16 %v1936
    %v2003 = vunpack.c.h.b16 %v1936
    %v2004 = vunpack.c.l.b16 %v1937
    %v2005 = vunpack.c.h.b16 %v1937
    %v2006 = vunpack.c.l.b16 %v1938
    %v2007 = vunpack.c.h.b16 %v1938
    %v2008 = vunpack.c.l.b16 %v1939
    %v2009 = vunpack.c.h.b16 %v1939
    %v2010 = vunpack.c.l.b16 %v1940
    %v2011 = vunpack.c.h.b16 %v1940
    %v2012 = vunpack.c.l.b16 %v1941
    %v2013 = vunpack.c.h.b16 %v1941
    %v2014 = vunpack.c.l.b16 %v1942
    %v2015 = vunpack.c.h.b16 %v1942
    %v2016 = vunpack.c.l.b16 %v1943
    %v2017 = vunpack.c.h.b16 %v1943
    %v2018 = vunpack.c.l.b16 %v1944
    %v2019 = vunpack.c.h.b16 %v1944
    %v2020 = vunpack.c.l.b16 %v1945
    %v2021 = vunpack.c.h.b16 %v1945
    %v2022 = vunpack.c.l.b16 %v1946
    %v2023 = vunpack.c.h.b16 %v1946
    %v2024 = vunpack.c.l.b16 %v1947
    %v2025 = vunpack.c.h.b16 %v1947
    %v2026 = vunpack.c.l.b16 %v1948
    %v2027 = vunpack.c.h.b16 %v1948
    %v2028 = vunpack.c.l.b16 %v1949
    %v2029 = vunpack.c.h.b16 %v1949
    %v2030 = vunpack.c.l.b16 %v1950
    %v2031 = vunpack.c.h.b16 %v1950
    %v2032 = vunpack.c.l.b16 %v1951
    %v2033 = vunpack.c.h.b16 %v1951
    %v2034 = vunpack.c.l.b16 %v1952
    %v2035 = vunpack.c.h.b16 %v1952
    %v2036 = vunpack.c.l.b16 %v1953
    %v2037 = vunpack.c.h.b16 %v1953
    %v2038 = vunpack.c.l.b16 %v1954
    %v2039 = vunpack.c.h.b16 %v1954
    %v2040 = vunpack.c.l.b16 %v1955
    %v2041 = vunpack.c.h.b16 %v1955
    %v2042 = vunpack.c.l.b16 %v1956
    %v2043 = vunpack.c.h.b16 %v1956
    %v2044 = vunpack.c.l.b16 %v1957
    %v2045 = vunpack.c.h.b16 %v1957
    %v2046 = vunpack.c.l.b16 %v1958
    %v2047 = vunpack.c.h.b16 %v1958
    %v2048 = vunpack.c.l.b16 %v1959
    %v2049 = vunpack.c.h.b16 %v1959
    %v2050 = vunpack.c.l.b16 %v1960
    %v2051 = vunpack.c.h.b16 %v1960
    %v2052 = vunpack.c.l.b16 %v1961
    %v2053 = vunpack.c.h.b16 %v1961
    %v2054 = vunpack.c.l.b16 %v1962
    %v2055 = vunpack.c.h.b16 %v1962
    %v2056 = vunpack.c.l.b16 %v1963
    %v2057 = vunpack.c.h.b16 %v1963
    %v2058 = vunpack.c.l.b16 %v1964
    %v2059 = vunpack.c.h.b16 %v1964
    %v2060 = vunpack.c.l.b16 %v1965
    %v2061 = vunpack.c.h.b16 %v1965
    %v2062 = vpack.c.b16 %v2002, %v1998
    %v2063 = vpack.c.b16 %v2003, %v1999
    %v2064 = vpack.c.b16 %v2004, %v2000
    %v2065 = vpack.c.b16 %v2005, %v2001
    %v2066 = vpack.c.b16 %v2010, %v2006
    %v2067 = vpack.c.b16 %v2011, %v2007
    %v2068 = vpack.c.b16 %v2012, %v2008
    %v2069 = vpack.c.b16 %v2013, %v2009
    %v2070 = vpack.c.b16 %v2018, %v2014
    %v2071 = vpack.c.b16 %v2019, %v2015
    %v2072 = vpack.c.b16 %v2020, %v2016
    %v2073 = vpack.c.b16 %v2021, %v2017
    %v2074 = vpack.c.b16 %v2026, %v2022
    %v2075 = vpack.c.b16 %v2027, %v2023
    %v2076 = vpack.c.b16 %v2028, %v2024
    %v2077 = vpack.c.b16 %v2029, %v2025
    %v2078 = vpack.c.b16 %v2034, %v2030
    %v2079 = vpack.c.b16 %v2035, %v2031
    %v2080 = vpack.c.b16 %v2036, %v2032
    %v2081 = vpack.c.b16 %v2037, %v2033
    %v2082 = vpack.c.b16 %v2042, %v2038
    %v2083 = vpack.c.b16 %v2043, %v2039
    %v2084 = vpack.c.b16 %v2044, %v2040
    %v2085 = vpack.c.b16 %v2045, %v2041
    %v2086 = vpack.c.b16 %v2050, %v2046
    %v2087 = vpack.c.b16 %v2051, %v2047
    %v2088 = vpack.c.b16 %v2052, %v2048
    %v2089 = vpack.c.b16 %v2053, %v2049
    %v2090 = vpack.c.b16 %v2058, %v2054
    %v2091 = vpack.c.b16 %v2059, %v2055
    %v2092 = vpack.c.b16 %v2060, %v2056
    %v2093 = vpack.c.b16 %v2061, %v2057
    %2126 = vmatprep.subr.bf16.mxu0 %v2091
    %2127 = vmatpush1.bf16.msra.mxu0 %v2090
    %2128 = vmatprep.subr.bf16.mxu0 %v2087
    %2129 = vmatpush1.bf16.msra.mxu0 %v2086
    %2130 = vmatprep.subr.bf16.mxu0 %v2083
    %2131 = vmatpush1.bf16.msra.mxu0 %v2082
    %2132 = vmatprep.subr.bf16.mxu0 %v2079
    %2133 = vmatpush1.bf16.msra.mxu0 %v2078
    %2134 = vmatprep.subr.bf16.mxu0 %v2075
    %2135 = vmatpush1.bf16.msra.mxu0 %v2074
    %2136 = vmatprep.subr.bf16.mxu0 %v2071
    %2137 = vmatpush1.bf16.msra.mxu0 %v2070
    %2138 = vmatprep.subr.bf16.mxu0 %v2067
    %2139 = vmatpush1.bf16.msra.mxu0 %v2066
    %2140 = vmatprep.subr.bf16.mxu0 %v2063
    %2141 = vmatpush1.bf16.msra.mxu0 %v2062
    %2142 = vmatprep.subr.bf16.mxu0 0
    %2143 = vmatpush2.bf16.msra.mxu0 0
    %2144 = vmatprep.subr.bf16.mxu0 0
    %2145 = vmatpush2.bf16.msra.mxu0 0
    %2146 = vmatprep.subr.bf16.mxu0 0
    %2147 = vmatpush2.bf16.msra.mxu0 0
    %2148 = vmatprep.subr.bf16.mxu0 0
    %2149 = vmatpush2.bf16.msra.mxu0 0
    %2150 = vmatprep.subr.bf16.mxu0 0
    %2151 = vmatpush2.bf16.msra.mxu0 0
    %2152 = vmatprep.subr.bf16.mxu0 0
    %2153 = vmatpush2.bf16.msra.mxu0 0
    %2154 = vmatprep.subr.bf16.mxu0 0
    %2155 = vmatpush2.bf16.msra.mxu0 0
    %2156 = vmatprep.subr.bf16.mxu0 0
    %2157 = vmatpush2.bf16.msra.mxu0 0
    %2158 = vmatprep.mubr.bf16.mxu0 0
    %2159 = vmatmul.mubr.bf16.gmra.mxu0 %v1933
    %v2160 = vpop.f32.mrf.mxu0
    %v2161 = vadd.f32 0.0, %v2160
    %v2162 = vpop.f32.mrf.mxu0
    %v2163 = vadd.f32 0.0, %v2162
    %v2164 = vpop.f32.mrf.mxu0
    %v2165 = vpop.f32.mrf.mxu0
    %2166 = vdwg.mxu0
    %2167 = vmatprep.subr.bf16.mxu0 %v2093
    %2168 = vmatpush1.bf16.msra.mxu0 %v2092
    %2169 = vmatprep.subr.bf16.mxu0 %v2089
    %2170 = vmatpush1.bf16.msra.mxu0 %v2088
    %2171 = vmatprep.subr.bf16.mxu0 %v2085
    %2172 = vmatpush1.bf16.msra.mxu0 %v2084
    %2173 = vmatprep.subr.bf16.mxu0 %v2081
    %2174 = vmatpush1.bf16.msra.mxu0 %v2080
    %2175 = vmatprep.subr.bf16.mxu0 %v2077
    %2176 = vmatpush1.bf16.msra.mxu0 %v2076
    %2177 = vmatprep.subr.bf16.mxu0 %v2073
    %2178 = vmatpush1.bf16.msra.mxu0 %v2072
    %2179 = vmatprep.subr.bf16.mxu0 %v2069
    %2180 = vmatpush1.bf16.msra.mxu0 %v2068
    %2181 = vmatprep.subr.bf16.mxu0 %v2065
    %2182 = vmatpush1.bf16.msra.mxu0 %v2064
    %2183 = vmatprep.subr.bf16.mxu0 0
    %2184 = vmatpush2.bf16.msra.mxu0 0
    %2185 = vmatprep.subr.bf16.mxu0 0
    %2186 = vmatpush2.bf16.msra.mxu0 0
    %2187 = vmatprep.subr.bf16.mxu0 0
    %2188 = vmatpush2.bf16.msra.mxu0 0
    %2189 = vmatprep.subr.bf16.mxu0 0
    %2190 = vmatpush2.bf16.msra.mxu0 0
    %2191 = vmatprep.subr.bf16.mxu0 0
    %2192 = vmatpush2.bf16.msra.mxu0 0
    %2193 = vmatprep.subr.bf16.mxu0 0
    %2194 = vmatpush2.bf16.msra.mxu0 0
    %2195 = vmatprep.subr.bf16.mxu0 0
    %2196 = vmatpush2.bf16.msra.mxu0 0
    %2197 = vmatprep.subr.bf16.mxu0 0
    %2198 = vmatpush2.bf16.msra.mxu0 0
    %2199 = vmatprep.mubr.bf16.mxu0 0
    %2200 = vmatmul.mubr.bf16.gmra.mxu0 %v1933
    %v2201 = vpop.f32.mrf.mxu0
    %v2202 = vadd.f32 0.0, %v2201
    %v2203 = vpop.f32.mrf.mxu0
    %v2204 = vadd.f32 0.0, %v2203
    %v2205 = vpop.f32.mrf.mxu0
    %v2206 = vpop.f32.mrf.mxu0
    %2207 = vdwg.mxu0
    %v2208 = vadd.f32 %v1929, %v2161
    %v2209 = vadd.f32 %v1930, %v2163
    %v2210 = vadd.f32 %v1931, %v2202
    %v2211 = vadd.f32 %v1932, %v2204
    %v2212 = vxor.u32 %v2208, 2147483648
    %v2213 = vxor.u32 %v2209, 2147483648
    %v2214 = vxor.u32 %v2210, 2147483648
    %v2215 = vmul.f32 %v2212, 1.442695
    %v2216 = vpow.pop %v2215
    %v2217 = vmul.f32 %v2213, 1.442695
    %v2218 = vpow.pop %v2217
    %v2219 = vmul.f32 %v2214, 1.442695
    %v2220 = vpow.pop %v2219
    %v2221 = vadd.f32 %v2216, 1.0
    %v2222 = vadd.f32 %v2218, 1.0
    %v2223 = vadd.f32 %v2220, 1.0
    %v2224 = vrcp.pop %v2221
    %v2225 = vmul.f32 1.0, %v2224
    %v2226 = vrcp.pop %v2222
    %v2227 = vmul.f32 1.0, %v2226
    %v2228 = vrcp.pop %v2223
    %v2229 = vmul.f32 1.0, %v2228
    %v2230 = vtanh.pop %v2211
    %v2231 = vmul.f32 %v2227, %v1921
    %v2232 = vmul.f32 %v2225, %v2230
    %v2233 = vadd.f32 %v2231, %v2232
    %v2234 = vtanh.pop %v2233
    %v2235 = vmul.f32 %v2229, %v2234
    %s2236 = scalar_lea.vmem [#allocation3], 40
    %2237 = vst [vmem:[%s2236] sm:$0xff] %v2235
    %s2238 = smul.u32 6, 4
    %s2239 = smul.addr %s2238, 8
    %s2240 = scalar_lea.vmem [#allocation2], %s2239
    %v2241 = vld [vmem:[%s2240] sm:$0xff]
    %v2242 = vld [vmem:[%s2240 + $0x8] sm:$0xff]
    %v2243 = vld [vmem:[%s2240 + $0x10] sm:$0xff]
    %v2244 = vld [vmem:[%s2240 + $0x18] sm:$0xff]
    %v2245 = vpack.c.bf16 %v2235, %v2235
    %v2246 = vld [vmem:[#allocation5] sm:$0xff]
    %v2247 = vld [vmem:[#allocation5 + $0x8] sm:$0xff]
    %v2248 = vld [vmem:[#allocation5 + $0x10] sm:$0xff]
    %v2249 = vld [vmem:[#allocation5 + $0x18] sm:$0xff]
    %v2250 = vld [vmem:[#allocation5 + $0x20] sm:$0xff]
    %v2251 = vld [vmem:[#allocation5 + $0x28] sm:$0xff]
    %v2252 = vld [vmem:[#allocation5 + $0x30] sm:$0xff]
    %v2253 = vld [vmem:[#allocation5 + $0x38] sm:$0xff]
    %v2254 = vld [vmem:[#allocation5 + $0x40] sm:$0xff]
    %v2255 = vld [vmem:[#allocation5 + $0x48] sm:$0xff]
    %v2256 = vld [vmem:[#allocation5 + $0x50] sm:$0xff]
    %v2257 = vld [vmem:[#allocation5 + $0x58] sm:$0xff]
    %v2258 = vld [vmem:[#allocation5 + $0x60] sm:$0xff]
    %v2259 = vld [vmem:[#allocation5 + $0x68] sm:$0xff]
    %v2260 = vld [vmem:[#allocation5 + $0x70] sm:$0xff]
    %v2261 = vld [vmem:[#allocation5 + $0x78] sm:$0xff]
    %v2262 = vld [vmem:[#allocation5 + $0x80] sm:$0xff]
    %v2263 = vld [vmem:[#allocation5 + $0x88] sm:$0xff]
    %v2264 = vld [vmem:[#allocation5 + $0x90] sm:$0xff]
    %v2265 = vld [vmem:[#allocation5 + $0x98] sm:$0xff]
    %v2266 = vld [vmem:[#allocation5 + $0xa0] sm:$0xff]
    %v2267 = vld [vmem:[#allocation5 + $0xa8] sm:$0xff]
    %v2268 = vld [vmem:[#allocation5 + $0xb0] sm:$0xff]
    %v2269 = vld [vmem:[#allocation5 + $0xb8] sm:$0xff]
    %v2270 = vld [vmem:[#allocation5 + $0xc0] sm:$0xff]
    %v2271 = vld [vmem:[#allocation5 + $0xc8] sm:$0xff]
    %v2272 = vld [vmem:[#allocation5 + $0xd0] sm:$0xff]
    %v2273 = vld [vmem:[#allocation5 + $0xd8] sm:$0xff]
    %v2274 = vld [vmem:[#allocation5 + $0xe0] sm:$0xff]
    %v2275 = vld [vmem:[#allocation5 + $0xe8] sm:$0xff]
    %v2276 = vld [vmem:[#allocation5 + $0xf0] sm:$0xff]
    %v2277 = vld [vmem:[#allocation5 + $0xf8] sm:$0xff]
    %v2310 = vunpack.c.l.b16 %v2246
    %v2311 = vunpack.c.h.b16 %v2246
    %v2312 = vunpack.c.l.b16 %v2247
    %v2313 = vunpack.c.h.b16 %v2247
    %v2314 = vunpack.c.l.b16 %v2248
    %v2315 = vunpack.c.h.b16 %v2248
    %v2316 = vunpack.c.l.b16 %v2249
    %v2317 = vunpack.c.h.b16 %v2249
    %v2318 = vunpack.c.l.b16 %v2250
    %v2319 = vunpack.c.h.b16 %v2250
    %v2320 = vunpack.c.l.b16 %v2251
    %v2321 = vunpack.c.h.b16 %v2251
    %v2322 = vunpack.c.l.b16 %v2252
    %v2323 = vunpack.c.h.b16 %v2252
    %v2324 = vunpack.c.l.b16 %v2253
    %v2325 = vunpack.c.h.b16 %v2253
    %v2326 = vunpack.c.l.b16 %v2254
    %v2327 = vunpack.c.h.b16 %v2254
    %v2328 = vunpack.c.l.b16 %v2255
    %v2329 = vunpack.c.h.b16 %v2255
    %v2330 = vunpack.c.l.b16 %v2256
    %v2331 = vunpack.c.h.b16 %v2256
    %v2332 = vunpack.c.l.b16 %v2257
    %v2333 = vunpack.c.h.b16 %v2257
    %v2334 = vunpack.c.l.b16 %v2258
    %v2335 = vunpack.c.h.b16 %v2258
    %v2336 = vunpack.c.l.b16 %v2259
    %v2337 = vunpack.c.h.b16 %v2259
    %v2338 = vunpack.c.l.b16 %v2260
    %v2339 = vunpack.c.h.b16 %v2260
    %v2340 = vunpack.c.l.b16 %v2261
    %v2341 = vunpack.c.h.b16 %v2261
    %v2342 = vunpack.c.l.b16 %v2262
    %v2343 = vunpack.c.h.b16 %v2262
    %v2344 = vunpack.c.l.b16 %v2263
    %v2345 = vunpack.c.h.b16 %v2263
    %v2346 = vunpack.c.l.b16 %v2264
    %v2347 = vunpack.c.h.b16 %v2264
    %v2348 = vunpack.c.l.b16 %v2265
    %v2349 = vunpack.c.h.b16 %v2265
    %v2350 = vunpack.c.l.b16 %v2266
    %v2351 = vunpack.c.h.b16 %v2266
    %v2352 = vunpack.c.l.b16 %v2267
    %v2353 = vunpack.c.h.b16 %v2267
    %v2354 = vunpack.c.l.b16 %v2268
    %v2355 = vunpack.c.h.b16 %v2268
    %v2356 = vunpack.c.l.b16 %v2269
    %v2357 = vunpack.c.h.b16 %v2269
    %v2358 = vunpack.c.l.b16 %v2270
    %v2359 = vunpack.c.h.b16 %v2270
    %v2360 = vunpack.c.l.b16 %v2271
    %v2361 = vunpack.c.h.b16 %v2271
    %v2362 = vunpack.c.l.b16 %v2272
    %v2363 = vunpack.c.h.b16 %v2272
    %v2364 = vunpack.c.l.b16 %v2273
    %v2365 = vunpack.c.h.b16 %v2273
    %v2366 = vunpack.c.l.b16 %v2274
    %v2367 = vunpack.c.h.b16 %v2274
    %v2368 = vunpack.c.l.b16 %v2275
    %v2369 = vunpack.c.h.b16 %v2275
    %v2370 = vunpack.c.l.b16 %v2276
    %v2371 = vunpack.c.h.b16 %v2276
    %v2372 = vunpack.c.l.b16 %v2277
    %v2373 = vunpack.c.h.b16 %v2277
    %v2374 = vpack.c.b16 %v2314, %v2310
    %v2375 = vpack.c.b16 %v2315, %v2311
    %v2376 = vpack.c.b16 %v2316, %v2312
    %v2377 = vpack.c.b16 %v2317, %v2313
    %v2378 = vpack.c.b16 %v2322, %v2318
    %v2379 = vpack.c.b16 %v2323, %v2319
    %v2380 = vpack.c.b16 %v2324, %v2320
    %v2381 = vpack.c.b16 %v2325, %v2321
    %v2382 = vpack.c.b16 %v2330, %v2326
    %v2383 = vpack.c.b16 %v2331, %v2327
    %v2384 = vpack.c.b16 %v2332, %v2328
    %v2385 = vpack.c.b16 %v2333, %v2329
    %v2386 = vpack.c.b16 %v2338, %v2334
    %v2387 = vpack.c.b16 %v2339, %v2335
    %v2388 = vpack.c.b16 %v2340, %v2336
    %v2389 = vpack.c.b16 %v2341, %v2337
    %v2390 = vpack.c.b16 %v2346, %v2342
    %v2391 = vpack.c.b16 %v2347, %v2343
    %v2392 = vpack.c.b16 %v2348, %v2344
    %v2393 = vpack.c.b16 %v2349, %v2345
    %v2394 = vpack.c.b16 %v2354, %v2350
    %v2395 = vpack.c.b16 %v2355, %v2351
    %v2396 = vpack.c.b16 %v2356, %v2352
    %v2397 = vpack.c.b16 %v2357, %v2353
    %v2398 = vpack.c.b16 %v2362, %v2358
    %v2399 = vpack.c.b16 %v2363, %v2359
    %v2400 = vpack.c.b16 %v2364, %v2360
    %v2401 = vpack.c.b16 %v2365, %v2361
    %v2402 = vpack.c.b16 %v2370, %v2366
    %v2403 = vpack.c.b16 %v2371, %v2367
    %v2404 = vpack.c.b16 %v2372, %v2368
    %v2405 = vpack.c.b16 %v2373, %v2369
    %2438 = vmatprep.subr.bf16.mxu0 %v2403
    %2439 = vmatpush1.bf16.msra.mxu0 %v2402
    %2440 = vmatprep.subr.bf16.mxu0 %v2399
    %2441 = vmatpush1.bf16.msra.mxu0 %v2398
    %2442 = vmatprep.subr.bf16.mxu0 %v2395
    %2443 = vmatpush1.bf16.msra.mxu0 %v2394
    %2444 = vmatprep.subr.bf16.mxu0 %v2391
    %2445 = vmatpush1.bf16.msra.mxu0 %v2390
    %2446 = vmatprep.subr.bf16.mxu0 %v2387
    %2447 = vmatpush1.bf16.msra.mxu0 %v2386
    %2448 = vmatprep.subr.bf16.mxu0 %v2383
    %2449 = vmatpush1.bf16.msra.mxu0 %v2382
    %2450 = vmatprep.subr.bf16.mxu0 %v2379
    %2451 = vmatpush1.bf16.msra.mxu0 %v2378
    %2452 = vmatprep.subr.bf16.mxu0 %v2375
    %2453 = vmatpush1.bf16.msra.mxu0 %v2374
    %2454 = vmatprep.subr.bf16.mxu0 0
    %2455 = vmatpush2.bf16.msra.mxu0 0
    %2456 = vmatprep.subr.bf16.mxu0 0
    %2457 = vmatpush2.bf16.msra.mxu0 0
    %2458 = vmatprep.subr.bf16.mxu0 0
    %2459 = vmatpush2.bf16.msra.mxu0 0
    %2460 = vmatprep.subr.bf16.mxu0 0
    %2461 = vmatpush2.bf16.msra.mxu0 0
    %2462 = vmatprep.subr.bf16.mxu0 0
    %2463 = vmatpush2.bf16.msra.mxu0 0
    %2464 = vmatprep.subr.bf16.mxu0 0
    %2465 = vmatpush2.bf16.msra.mxu0 0
    %2466 = vmatprep.subr.bf16.mxu0 0
    %2467 = vmatpush2.bf16.msra.mxu0 0
    %2468 = vmatprep.subr.bf16.mxu0 0
    %2469 = vmatpush2.bf16.msra.mxu0 0
    %2470 = vmatprep.mubr.bf16.mxu0 0
    %2471 = vmatmul.mubr.bf16.gmra.mxu0 %v2245
    %v2472 = vpop.f32.mrf.mxu0
    %v2473 = vadd.f32 0.0, %v2472
    %v2474 = vpop.f32.mrf.mxu0
    %v2475 = vadd.f32 0.0, %v2474
    %v2476 = vpop.f32.mrf.mxu0
    %v2477 = vpop.f32.mrf.mxu0
    %2478 = vdwg.mxu0
    %2479 = vmatprep.subr.bf16.mxu0 %v2405
    %2480 = vmatpush1.bf16.msra.mxu0 %v2404
    %2481 = vmatprep.subr.bf16.mxu0 %v2401
    %2482 = vmatpush1.bf16.msra.mxu0 %v2400
    %2483 = vmatprep.subr.bf16.mxu0 %v2397
    %2484 = vmatpush1.bf16.msra.mxu0 %v2396
    %2485 = vmatprep.subr.bf16.mxu0 %v2393
    %2486 = vmatpush1.bf16.msra.mxu0 %v2392
    %2487 = vmatprep.subr.bf16.mxu0 %v2389
    %2488 = vmatpush1.bf16.msra.mxu0 %v2388
    %2489 = vmatprep.subr.bf16.mxu0 %v2385
    %2490 = vmatpush1.bf16.msra.mxu0 %v2384
    %2491 = vmatprep.subr.bf16.mxu0 %v2381
    %2492 = vmatpush1.bf16.msra.mxu0 %v2380
    %2493 = vmatprep.subr.bf16.mxu0 %v2377
    %2494 = vmatpush1.bf16.msra.mxu0 %v2376
    %2495 = vmatprep.subr.bf16.mxu0 0
    %2496 = vmatpush2.bf16.msra.mxu0 0
    %2497 = vmatprep.subr.bf16.mxu0 0
    %2498 = vmatpush2.bf16.msra.mxu0 0
    %2499 = vmatprep.subr.bf16.mxu0 0
    %2500 = vmatpush2.bf16.msra.mxu0 0
    %2501 = vmatprep.subr.bf16.mxu0 0
    %2502 = vmatpush2.bf16.msra.mxu0 0
    %2503 = vmatprep.subr.bf16.mxu0 0
    %2504 = vmatpush2.bf16.msra.mxu0 0
    %2505 = vmatprep.subr.bf16.mxu0 0
    %2506 = vmatpush2.bf16.msra.mxu0 0
    %2507 = vmatprep.subr.bf16.mxu0 0
    %2508 = vmatpush2.bf16.msra.mxu0 0
    %2509 = vmatprep.subr.bf16.mxu0 0
    %2510 = vmatpush2.bf16.msra.mxu0 0
    %2511 = vmatprep.mubr.bf16.mxu0 0
    %2512 = vmatmul.mubr.bf16.gmra.mxu0 %v2245
    %v2513 = vpop.f32.mrf.mxu0
    %v2514 = vadd.f32 0.0, %v2513
    %v2515 = vpop.f32.mrf.mxu0
    %v2516 = vadd.f32 0.0, %v2515
    %v2517 = vpop.f32.mrf.mxu0
    %v2518 = vpop.f32.mrf.mxu0
    %2519 = vdwg.mxu0
    %v2520 = vadd.f32 %v2241, %v2473
    %v2521 = vadd.f32 %v2242, %v2475
    %v2522 = vadd.f32 %v2243, %v2514
    %v2523 = vadd.f32 %v2244, %v2516
    %v2524 = vxor.u32 %v2520, 2147483648
    %v2525 = vxor.u32 %v2521, 2147483648
    %v2526 = vxor.u32 %v2522, 2147483648
    %v2527 = vmul.f32 %v2524, 1.442695
    %v2528 = vpow.pop %v2527
    %v2529 = vmul.f32 %v2525, 1.442695
    %v2530 = vpow.pop %v2529
    %v2531 = vmul.f32 %v2526, 1.442695
    %v2532 = vpow.pop %v2531
    %v2533 = vadd.f32 %v2528, 1.0
    %v2534 = vadd.f32 %v2530, 1.0
    %v2535 = vadd.f32 %v2532, 1.0
    %v2536 = vrcp.pop %v2533
    %v2537 = vmul.f32 1.0, %v2536
    %v2538 = vrcp.pop %v2534
    %v2539 = vmul.f32 1.0, %v2538
    %v2540 = vrcp.pop %v2535
    %v2541 = vmul.f32 1.0, %v2540
    %v2542 = vtanh.pop %v2523
    %v2543 = vmul.f32 %v2539, %v2233
    %v2544 = vmul.f32 %v2537, %v2542
    %v2545 = vadd.f32 %v2543, %v2544
    %v2546 = vtanh.pop %v2545
    %v2547 = vmul.f32 %v2541, %v2546
    %s2548 = scalar_lea.vmem [#allocation3], 48
    %2549 = vst [vmem:[%s2548] sm:$0xff] %v2547
    %s2550 = smul.u32 7, 4
    %s2551 = smul.addr %s2550, 8
    %s2552 = scalar_lea.vmem [#allocation2], %s2551
    %v2553 = vld [vmem:[%s2552] sm:$0xff]
    %v2554 = vld [vmem:[%s2552 + $0x8] sm:$0xff]
    %v2555 = vld [vmem:[%s2552 + $0x10] sm:$0xff]
    %v2556 = vld [vmem:[%s2552 + $0x18] sm:$0xff]
    %v2557 = vpack.c.bf16 %v2547, %v2547
    %v2558 = vld [vmem:[#allocation5] sm:$0xff]
    %v2559 = vld [vmem:[#allocation5 + $0x8] sm:$0xff]
    %v2560 = vld [vmem:[#allocation5 + $0x10] sm:$0xff]
    %v2561 = vld [vmem:[#allocation5 + $0x18] sm:$0xff]
    %v2562 = vld [vmem:[#allocation5 + $0x20] sm:$0xff]
    %v2563 = vld [vmem:[#allocation5 + $0x28] sm:$0xff]
    %v2564 = vld [vmem:[#allocation5 + $0x30] sm:$0xff]
    %v2565 = vld [vmem:[#allocation5 + $0x38] sm:$0xff]
    %v2566 = vld [vmem:[#allocation5 + $0x40] sm:$0xff]
    %v2567 = vld [vmem:[#allocation5 + $0x48] sm:$0xff]
    %v2568 = vld [vmem:[#allocation5 + $0x50] sm:$0xff]
    %v2569 = vld [vmem:[#allocation5 + $0x58] sm:$0xff]
    %v2570 = vld [vmem:[#allocation5 + $0x60] sm:$0xff]
    %v2571 = vld [vmem:[#allocation5 + $0x68] sm:$0xff]
    %v2572 = vld [vmem:[#allocation5 + $0x70] sm:$0xff]
    %v2573 = vld [vmem:[#allocation5 + $0x78] sm:$0xff]
    %v2574 = vld [vmem:[#allocation5 + $0x80] sm:$0xff]
    %v2575 = vld [vmem:[#allocation5 + $0x88] sm:$0xff]
    %v2576 = vld [vmem:[#allocation5 + $0x90] sm:$0xff]
    %v2577 = vld [vmem:[#allocation5 + $0x98] sm:$0xff]
    %v2578 = vld [vmem:[#allocation5 + $0xa0] sm:$0xff]
    %v2579 = vld [vmem:[#allocation5 + $0xa8] sm:$0xff]
    %v2580 = vld [vmem:[#allocation5 + $0xb0] sm:$0xff]
    %v2581 = vld [vmem:[#allocation5 + $0xb8] sm:$0xff]
    %v2582 = vld [vmem:[#allocation5 + $0xc0] sm:$0xff]
    %v2583 = vld [vmem:[#allocation5 + $0xc8] sm:$0xff]
    %v2584 = vld [vmem:[#allocation5 + $0xd0] sm:$0xff]
    %v2585 = vld [vmem:[#allocation5 + $0xd8] sm:$0xff]
    %v2586 = vld [vmem:[#allocation5 + $0xe0] sm:$0xff]
    %v2587 = vld [vmem:[#allocation5 + $0xe8] sm:$0xff]
    %v2588 = vld [vmem:[#allocation5 + $0xf0] sm:$0xff]
    %v2589 = vld [vmem:[#allocation5 + $0xf8] sm:$0xff]
    %v2622 = vunpack.c.l.b16 %v2558
    %v2623 = vunpack.c.h.b16 %v2558
    %v2624 = vunpack.c.l.b16 %v2559
    %v2625 = vunpack.c.h.b16 %v2559
    %v2626 = vunpack.c.l.b16 %v2560
    %v2627 = vunpack.c.h.b16 %v2560
    %v2628 = vunpack.c.l.b16 %v2561
    %v2629 = vunpack.c.h.b16 %v2561
    %v2630 = vunpack.c.l.b16 %v2562
    %v2631 = vunpack.c.h.b16 %v2562
    %v2632 = vunpack.c.l.b16 %v2563
    %v2633 = vunpack.c.h.b16 %v2563
    %v2634 = vunpack.c.l.b16 %v2564
    %v2635 = vunpack.c.h.b16 %v2564
    %v2636 = vunpack.c.l.b16 %v2565
    %v2637 = vunpack.c.h.b16 %v2565
    %v2638 = vunpack.c.l.b16 %v2566
    %v2639 = vunpack.c.h.b16 %v2566
    %v2640 = vunpack.c.l.b16 %v2567
    %v2641 = vunpack.c.h.b16 %v2567
    %v2642 = vunpack.c.l.b16 %v2568
    %v2643 = vunpack.c.h.b16 %v2568
    %v2644 = vunpack.c.l.b16 %v2569
    %v2645 = vunpack.c.h.b16 %v2569
    %v2646 = vunpack.c.l.b16 %v2570
    %v2647 = vunpack.c.h.b16 %v2570
    %v2648 = vunpack.c.l.b16 %v2571
    %v2649 = vunpack.c.h.b16 %v2571
    %v2650 = vunpack.c.l.b16 %v2572
    %v2651 = vunpack.c.h.b16 %v2572
    %v2652 = vunpack.c.l.b16 %v2573
    %v2653 = vunpack.c.h.b16 %v2573
    %v2654 = vunpack.c.l.b16 %v2574
    %v2655 = vunpack.c.h.b16 %v2574
    %v2656 = vunpack.c.l.b16 %v2575
    %v2657 = vunpack.c.h.b16 %v2575
    %v2658 = vunpack.c.l.b16 %v2576
    %v2659 = vunpack.c.h.b16 %v2576
    %v2660 = vunpack.c.l.b16 %v2577
    %v2661 = vunpack.c.h.b16 %v2577
    %v2662 = vunpack.c.l.b16 %v2578
    %v2663 = vunpack.c.h.b16 %v2578
    %v2664 = vunpack.c.l.b16 %v2579
    %v2665 = vunpack.c.h.b16 %v2579
    %v2666 = vunpack.c.l.b16 %v2580
    %v2667 = vunpack.c.h.b16 %v2580
    %v2668 = vunpack.c.l.b16 %v2581
    %v2669 = vunpack.c.h.b16 %v2581
    %v2670 = vunpack.c.l.b16 %v2582
    %v2671 = vunpack.c.h.b16 %v2582
    %v2672 = vunpack.c.l.b16 %v2583
    %v2673 = vunpack.c.h.b16 %v2583
    %v2674 = vunpack.c.l.b16 %v2584
    %v2675 = vunpack.c.h.b16 %v2584
    %v2676 = vunpack.c.l.b16 %v2585
    %v2677 = vunpack.c.h.b16 %v2585
    %v2678 = vunpack.c.l.b16 %v2586
    %v2679 = vunpack.c.h.b16 %v2586
    %v2680 = vunpack.c.l.b16 %v2587
    %v2681 = vunpack.c.h.b16 %v2587
    %v2682 = vunpack.c.l.b16 %v2588
    %v2683 = vunpack.c.h.b16 %v2588
    %v2684 = vunpack.c.l.b16 %v2589
    %v2685 = vunpack.c.h.b16 %v2589
    %v2686 = vpack.c.b16 %v2626, %v2622
    %v2687 = vpack.c.b16 %v2627, %v2623
    %v2688 = vpack.c.b16 %v2628, %v2624
    %v2689 = vpack.c.b16 %v2629, %v2625
    %v2690 = vpack.c.b16 %v2634, %v2630
    %v2691 = vpack.c.b16 %v2635, %v2631
    %v2692 = vpack.c.b16 %v2636, %v2632
    %v2693 = vpack.c.b16 %v2637, %v2633
    %v2694 = vpack.c.b16 %v2642, %v2638
    %v2695 = vpack.c.b16 %v2643, %v2639
    %v2696 = vpack.c.b16 %v2644, %v2640
    %v2697 = vpack.c.b16 %v2645, %v2641
    %v2698 = vpack.c.b16 %v2650, %v2646
    %v2699 = vpack.c.b16 %v2651, %v2647
    %v2700 = vpack.c.b16 %v2652, %v2648
    %v2701 = vpack.c.b16 %v2653, %v2649
    %v2702 = vpack.c.b16 %v2658, %v2654
    %v2703 = vpack.c.b16 %v2659, %v2655
    %v2704 = vpack.c.b16 %v2660, %v2656
    %v2705 = vpack.c.b16 %v2661, %v2657
    %v2706 = vpack.c.b16 %v2666, %v2662
    %v2707 = vpack.c.b16 %v2667, %v2663
    %v2708 = vpack.c.b16 %v2668, %v2664
    %v2709 = vpack.c.b16 %v2669, %v2665
    %v2710 = vpack.c.b16 %v2674, %v2670
    %v2711 = vpack.c.b16 %v2675, %v2671
    %v2712 = vpack.c.b16 %v2676, %v2672
    %v2713 = vpack.c.b16 %v2677, %v2673
    %v2714 = vpack.c.b16 %v2682, %v2678
    %v2715 = vpack.c.b16 %v2683, %v2679
    %v2716 = vpack.c.b16 %v2684, %v2680
    %v2717 = vpack.c.b16 %v2685, %v2681
    %2750 = vmatprep.subr.bf16.mxu0 %v2715
    %2751 = vmatpush1.bf16.msra.mxu0 %v2714
    %2752 = vmatprep.subr.bf16.mxu0 %v2711
    %2753 = vmatpush1.bf16.msra.mxu0 %v2710
    %2754 = vmatprep.subr.bf16.mxu0 %v2707
    %2755 = vmatpush1.bf16.msra.mxu0 %v2706
    %2756 = vmatprep.subr.bf16.mxu0 %v2703
    %2757 = vmatpush1.bf16.msra.mxu0 %v2702
    %2758 = vmatprep.subr.bf16.mxu0 %v2699
    %2759 = vmatpush1.bf16.msra.mxu0 %v2698
    %2760 = vmatprep.subr.bf16.mxu0 %v2695
    %2761 = vmatpush1.bf16.msra.mxu0 %v2694
    %2762 = vmatprep.subr.bf16.mxu0 %v2691
    %2763 = vmatpush1.bf16.msra.mxu0 %v2690
    %2764 = vmatprep.subr.bf16.mxu0 %v2687
    %2765 = vmatpush1.bf16.msra.mxu0 %v2686
    %2766 = vmatprep.subr.bf16.mxu0 0
    %2767 = vmatpush2.bf16.msra.mxu0 0
    %2768 = vmatprep.subr.bf16.mxu0 0
    %2769 = vmatpush2.bf16.msra.mxu0 0
    %2770 = vmatprep.subr.bf16.mxu0 0
    %2771 = vmatpush2.bf16.msra.mxu0 0
    %2772 = vmatprep.subr.bf16.mxu0 0
    %2773 = vmatpush2.bf16.msra.mxu0 0
    %2774 = vmatprep.subr.bf16.mxu0 0
    %2775 = vmatpush2.bf16.msra.mxu0 0
    %2776 = vmatprep.subr.bf16.mxu0 0
    %2777 = vmatpush2.bf16.msra.mxu0 0
    %2778 = vmatprep.subr.bf16.mxu0 0
    %2779 = vmatpush2.bf16.msra.mxu0 0
    %2780 = vmatprep.subr.bf16.mxu0 0
    %2781 = vmatpush2.bf16.msra.mxu0 0
    %2782 = vmatprep.mubr.bf16.mxu0 0
    %2783 = vmatmul.mubr.bf16.gmra.mxu0 %v2557
    %v2784 = vpop.f32.mrf.mxu0
    %v2785 = vadd.f32 0.0, %v2784
    %v2786 = vpop.f32.mrf.mxu0
    %v2787 = vadd.f32 0.0, %v2786
    %v2788 = vpop.f32.mrf.mxu0
    %v2789 = vpop.f32.mrf.mxu0
    %2790 = vdwg.mxu0
    %2791 = vmatprep.subr.bf16.mxu0 %v2717
    %2792 = vmatpush1.bf16.msra.mxu0 %v2716
    %2793 = vmatprep.subr.bf16.mxu0 %v2713
    %2794 = vmatpush1.bf16.msra.mxu0 %v2712
    %2795 = vmatprep.subr.bf16.mxu0 %v2709
    %2796 = vmatpush1.bf16.msra.mxu0 %v2708
    %2797 = vmatprep.subr.bf16.mxu0 %v2705
    %2798 = vmatpush1.bf16.msra.mxu0 %v2704
    %2799 = vmatprep.subr.bf16.mxu0 %v2701
    %2800 = vmatpush1.bf16.msra.mxu0 %v2700
    %2801 = vmatprep.subr.bf16.mxu0 %v2697
    %2802 = vmatpush1.bf16.msra.mxu0 %v2696
    %2803 = vmatprep.subr.bf16.mxu0 %v2693
    %2804 = vmatpush1.bf16.msra.mxu0 %v2692
    %2805 = vmatprep.subr.bf16.mxu0 %v2689
    %2806 = vmatpush1.bf16.msra.mxu0 %v2688
    %2807 = vmatprep.subr.bf16.mxu0 0
    %2808 = vmatpush2.bf16.msra.mxu0 0
    %2809 = vmatprep.subr.bf16.mxu0 0
    %2810 = vmatpush2.bf16.msra.mxu0 0
    %2811 = vmatprep.subr.bf16.mxu0 0
    %2812 = vmatpush2.bf16.msra.mxu0 0
    %2813 = vmatprep.subr.bf16.mxu0 0
    %2814 = vmatpush2.bf16.msra.mxu0 0
    %2815 = vmatprep.subr.bf16.mxu0 0
    %2816 = vmatpush2.bf16.msra.mxu0 0
    %2817 = vmatprep.subr.bf16.mxu0 0
    %2818 = vmatpush2.bf16.msra.mxu0 0
    %2819 = vmatprep.subr.bf16.mxu0 0
    %2820 = vmatpush2.bf16.msra.mxu0 0
    %2821 = vmatprep.subr.bf16.mxu0 0
    %2822 = vmatpush2.bf16.msra.mxu0 0
    %2823 = vmatprep.mubr.bf16.mxu0 0
    %2824 = vmatmul.mubr.bf16.gmra.mxu0 %v2557
    %v2825 = vpop.f32.mrf.mxu0
    %v2826 = vadd.f32 0.0, %v2825
    %v2827 = vpop.f32.mrf.mxu0
    %v2828 = vadd.f32 0.0, %v2827
    %v2829 = vpop.f32.mrf.mxu0
    %v2830 = vpop.f32.mrf.mxu0
    %2831 = vdwg.mxu0
    %v2832 = vadd.f32 %v2553, %v2785
    %v2833 = vadd.f32 %v2554, %v2787
    %v2834 = vadd.f32 %v2555, %v2826
    %v2835 = vadd.f32 %v2556, %v2828
    %v2836 = vxor.u32 %v2832, 2147483648
    %v2837 = vxor.u32 %v2833, 2147483648
    %v2838 = vxor.u32 %v2834, 2147483648
    %v2839 = vmul.f32 %v2836, 1.442695
    %v2840 = vpow.pop %v2839
    %v2841 = vmul.f32 %v2837, 1.442695
    %v2842 = vpow.pop %v2841
    %v2843 = vmul.f32 %v2838, 1.442695
    %v2844 = vpow.pop %v2843
    %v2845 = vadd.f32 %v2840, 1.0
    %v2846 = vadd.f32 %v2842, 1.0
    %v2847 = vadd.f32 %v2844, 1.0
    %v2848 = vrcp.pop %v2845
    %v2849 = vmul.f32 1.0, %v2848
    %v2850 = vrcp.pop %v2846
    %v2851 = vmul.f32 1.0, %v2850
    %v2852 = vrcp.pop %v2847
    %v2853 = vmul.f32 1.0, %v2852
    %v2854 = vtanh.pop %v2835
    %v2855 = vmul.f32 %v2851, %v2545
    %v2856 = vmul.f32 %v2849, %v2854
    %v2857 = vadd.f32 %v2855, %v2856
    %v2858 = vtanh.pop %v2857
    %v2859 = vmul.f32 %v2853, %v2858
    %s2860 = scalar_lea.vmem [#allocation3], 56
    %2861 = vst [vmem:[%s2860] sm:$0xff] %v2859
    %v2862 = vld [vmem:[#allocation3] sm:$0xff]
    %v2863 = vld [vmem:[#allocation3 + $0x8] sm:$0xff]
    %v2864 = vld [vmem:[#allocation3 + $0x10] sm:$0xff]
    %v2865 = vld [vmem:[#allocation3 + $0x18] sm:$0xff]
    %v2866 = vld [vmem:[#allocation3 + $0x20] sm:$0xff]
    %v2867 = vld [vmem:[#allocation3 + $0x28] sm:$0xff]
    %v2868 = vld [vmem:[#allocation3 + $0x30] sm:$0xff]
    %v2869 = vld [vmem:[#allocation3 + $0x38] sm:$0xff]
    %v2870 = vld [vmem:[%s4] sm:$0x1]
    %v2872 = vlaneseq
    %v2873 = vshrl.u32 %v2872, 7
    %v2874 = vsub.s32 0, %v2873
    %v2875 = vrot.slane %v2870, %v2874
    %v2877 = vmul.f32 %v2862, %v2875
    %v2878 = vmul.f32 %v2863, %v2875
    %v2879 = vmul.f32 %v2864, %v2875
    %v2880 = vmul.f32 %v2865, %v2875
    %v2881 = vmul.f32 %v2866, %v2875
    %v2882 = vmul.f32 %v2867, %v2875
    %v2883 = vmul.f32 %v2868, %v2875
    %v2884 = vmul.f32 %v2869, %v2875
    %2885 = vadd.xlane.f32.xlu0 %v2877
    %v2886 = vpop.xlane.xlu0 %2885
    %2887 = vadd.xlane.f32.xlu0 %v2878
    %v2888 = vpop.xlane.xlu0 %2887
    %2889 = vadd.xlane.f32.xlu0 %v2879
    %v2890 = vpop.xlane.xlu0 %2889
    %2891 = vadd.xlane.f32.xlu0 %v2880
    %v2892 = vpop.xlane.xlu0 %2891
    %2893 = vadd.xlane.f32.xlu0 %v2881
    %v2894 = vpop.xlane.xlu0 %2893
    %2895 = vadd.xlane.f32.xlu0 %v2882
    %v2896 = vpop.xlane.xlu0 %2895
    %2897 = vadd.xlane.f32.xlu0 %v2883
    %v2898 = vpop.xlane.xlu0 %2897
    %2899 = vadd.xlane.f32.xlu0 %v2884
    %v2900 = vpop.xlane.xlu0 %2899
    %v2901 = vld [vmem:[#allocation4] sm:$0x1]
    %v2903 = vlaneseq
    %v2904 = vshrl.u32 %v2903, 7
    %v2905 = vsub.s32 0, %v2904
    %v2906 = vrot.slane %v2901, %v2905
    %v2908 = vadd.f32 %v2886, %v2906
    %v2909 = vadd.f32 %v2888, %v2906
    %v2910 = vadd.f32 %v2890, %v2906
    %v2911 = vadd.f32 %v2892, %v2906
    %v2912 = vadd.f32 %v2894, %v2906
    %v2913 = vadd.f32 %v2896, %v2906
    %v2914 = vadd.f32 %v2898, %v2906
    %v2915 = vadd.f32 %v2900, %v2906
    %vm2916 = vcmask 7168
    %2917 = vst.msk [vmem:[%s6] sm:$0xff] %vm2916, %v2908
    %2918 = vst.msk [vmem:[%s6 + $0x8] sm:$0xff] %vm2916, %v2909
    %2919 = vst.msk [vmem:[%s6 + $0x10] sm:$0xff] %vm2916, %v2910
    %2920 = vst.msk [vmem:[%s6 + $0x18] sm:$0xff] %vm2916, %v2911
    %2921 = vst.msk [vmem:[%s6 + $0x20] sm:$0xff] %vm2916, %v2912
    %2922 = vst.msk [vmem:[%s6 + $0x28] sm:$0xff] %vm2916, %v2913
    %2923 = vst.msk [vmem:[%s6 + $0x30] sm:$0xff] %vm2916, %v2914
    %2924 = vst.msk [vmem:[%s6 + $0x38] sm:$0xff] %vm2916, %v2915
    // Predicated region
    $region30: #{tpu_custom_call.1} parent=1 // pred_check
      _
    $region31: #{tpu_custom_call.1} parent=1 // pred_check_branch
      %2926 = sbr.rel (0) target = $region33
    $region32: #{tpu_custom_call.1} parent=1 // pred_region
      _
    $region33: #{tpu_custom_call.1} parent=1 // pred_fallthru
      _
    // Predicated region
    $region34: #{tpu_custom_call.1} parent=1 // pred_check
      _
    $region35: #{tpu_custom_call.1} parent=1 // pred_check_branch
      %2928 = sbr.rel (0) target = $region37
    $region36: #{tpu_custom_call.1} parent=1 // pred_region
      _
    $region37: #{tpu_custom_call.1} parent=1 // pred_fallthru
      _
    %2929 = vsyncpa [#allocation6], 1

</llo_original>
